<compile_context>
chip_gen: v5e
topology: v5e:2x2
jax: 0.10.0
libtpu: 0.0.40
codegen_flags: <defaults>
</compile_context>

<pallas_src>
import math

import jax
import jax.numpy as jnp
from jax import lax
from jax.experimental import pallas as pl
from jax.experimental.pallas import tpu as pltpu

LANE = 128  # TPU lane width; activations / parameter blocks are padded to 128 lanes.


def _pad_block(w, rows, cols):
    w = w.astype(jnp.float32)
    r, c = w.shape
    return jnp.pad(w, ((0, rows - r), (0, cols - c)))


def _pack_params(params, Fin, H, OUT):
    """Pack all parameters into:
       * w_big : (7*LANE, LANE) f32 — one 128x128 zero-padded block per weight matrix
                 (mlp1 split into its mean/max halves so MLP-1 fuses to one dot).
       * b_big : (16, LANE) f32 — biases + pool GraphConv weight rows.
       * pool_b: (3,) f32 — SAGPool score biases (read from SMEM as scalars).
    """
    L = LANE
    f32 = jnp.float32
    m1 = params["mlp1_w"].astype(f32)
    w_big = jnp.concatenate(
        [
            _pad_block(params["gcn1_w"], L, L),   # rows [0, L)
            _pad_block(params["gcn2_w"], L, L),   # rows [L, 2L)
            _pad_block(params["gcn3_w"], L, L),   # rows [2L, 3L)
            _pad_block(m1[:H], L, L),             # rows [3L, 4L)  mean half of mlp1
            _pad_block(m1[H:], L, L),             # rows [4L, 5L)  max  half of mlp1
            _pad_block(params["mlp2_w"], L, L),   # rows [5L, 6L)
            _pad_block(params["mlp3_w"], L, L),   # rows [6L, 7L)  (128-row pad = bugfix)
        ],
        axis=0,
    )

    b_rows = [
        _pad_block(params["gcn1_b"], 1, L),         # 0
        _pad_block(params["gcn2_b"], 1, L),         # 1
        _pad_block(params["gcn3_b"], 1, L),         # 2
        _pad_block(params["mlp1_b"], 1, L),         # 3
        _pad_block(params["mlp2_b"], 1, L),         # 4
        _pad_block(params["mlp3_b"], 1, L),         # 5
        _pad_block(params["pool1_wrel"].T, 1, L),   # 6
        _pad_block(params["pool1_wroot"].T, 1, L),  # 7
        _pad_block(params["pool2_wrel"].T, 1, L),   # 8
        _pad_block(params["pool2_wroot"].T, 1, L),  # 9
        _pad_block(params["pool3_wrel"].T, 1, L),   # 10
        _pad_block(params["pool3_wroot"].T, 1, L),  # 11
    ]
    b_big = jnp.concatenate(b_rows, axis=0)
    rpad = (-b_big.shape[0]) % 8
    if rpad:
        b_big = jnp.pad(b_big, ((0, rpad), (0, 0)))

    pool_b = jnp.concatenate(
        [params["pool1_b"].reshape(-1), params["pool2_b"].reshape(-1),
         params["pool3_b"].reshape(-1)]
    ).astype(f32)
    return w_big, b_big, pool_b


def sagpool_classifier_forward_batched(x, adj, params):
    """x: (G, N, Fin), adj: (G, N, N) with adj[g, i, j] = 1 for edge j -> i.
       Returns (G, OUT) log-probabilities."""
    G, N, Fin = x.shape
    H = params["gcn1_w"].shape[1]
    OUT = params["mlp3_w"].shape[1]
    L = LANE
    assert Fin <= L and H <= L and OUT <= L and H % 2 == 0
    f32 = jnp.float32

    # SAGPooling with float ratio uses ceil(ratio * num_nodes_in_current_graph)
    k1 = math.ceil(0.5 * N)
    k2 = math.ceil(0.5 * k1)
    k3 = math.ceil(0.5 * k2)

    w_big, b_big, pool_b = _pack_params(params, Fin, H, OUT)
    x_pad = jnp.pad(x.astype(f32), ((0, 0), (0, 0), (0, L - Fin)))  # lane-dense input
    adj_f = adj.astype(f32)

    # Static row offsets into the packed weight slab.
    oG1, oG2, oG3, oM1, oM2, oM3 = 0, L, 2 * L, 3 * L, 5 * L, 6 * L

    def kernel(x_ref, adj_ref, w_ref, b_ref, poolb_ref, o_ref):
        X = x_ref[...]            # (N, L) — lanes >= Fin are zero
        A = adj_ref[...]          # (N, N)
        Bv = b_ref[...]           # (16, L)
        NEG = jnp.float32(-1e30)

        ii = lax.broadcasted_iota(jnp.int32, (N, N), 0)
        jj = lax.broadcasted_iota(jnp.int32, (N, N), 1)
        eye = (ii == jj).astype(f32)

        def block(h_in, mask_col, mask_row, w_off, b_row, wrel_row, wroot_row, pb, k):
            w = w_ref[w_off:w_off + L, :]            # (L, L) static, aligned slice
            b_gcn = Bv[b_row:b_row + 1, :]           # (1, L)
            wr = Bv[wrel_row:wrel_row + 1, :]
            wo = Bv[wroot_row:wroot_row + 1, :]

            # ---- GCNConv on the active sub-graph (3 MXU pushes per block) ----
            # degree of the masked sub-graph + self loop, on VPU/XLU (no MXU).
            deg = mask_col * jnp.sum(A * mask_row, axis=1, keepdims=True) + mask_col
            dis = mask_col * lax.rsqrt(jnp.maximum(deg, 1.0))    # active deg >= 1
            z = jnp.dot(h_in, w, preferred_element_type=f32)             # MXU 1: X W
            dz = dis * z                                                 # D^-1/2 Z
            agg = jnp.dot(A, dz, preferred_element_type=f32)             # MXU 2
            # masked bias -> h is exactly 0 on inactive rows (and lanes >= H)
            h = jnp.maximum(dis * (agg + dz) + mask_col * b_gcn, 0.0)

            # ---- SAGPooling score: tanh(GraphConv(h) -> 1) ----
            aggS = jnp.dot(A, h, preferred_element_type=f32)             # MXU 3
            s = jnp.tanh(jnp.sum(aggS * wr + h * wo, axis=1, keepdims=True) + pb)

            # ---- top-k over active nodes (ties -> lowest index), transpose-free ----
            sm_col = jnp.where(mask_col > 0, s, NEG)                     # (N, 1)
            sm_row = jnp.sum(sm_col * eye, axis=0, keepdims=True)        # (1, N)
            s_i = jnp.broadcast_to(sm_col, (N, N))
            s_j = jnp.broadcast_to(sm_row, (N, N))
            beats = (s_j > s_i) | ((s_j == s_i) & (jj < ii))
            rank = jnp.sum(beats.astype(f32), axis=1, keepdims=True)
            nmask_col = jnp.where((mask_col > 0) & (rank < jnp.float32(k)), 1.0, 0.0)
            nmask_row = jnp.sum(nmask_col * eye, axis=0, keepdims=True)

            # ---- x <- x * score on kept nodes; whole-graph mean/max readout ----
            xp = h * s
            mean = jnp.sum(xp * nmask_col, axis=0, keepdims=True) / jnp.float32(k)
            mx = jnp.max(jnp.where(nmask_col > 0, xp, NEG), axis=0, keepdims=True)
            return xp, nmask_col, nmask_row, mean, mx

        mask0_col = jnp.ones((N, 1), f32)
        mask0_row = jnp.ones((1, N), f32)

        xp1, c1, r1, mean1, max1 = block(X,   mask0_col, mask0_row, oG1, 0, 6, 7, poolb_ref[0], k1)
        xp2, c2, r2, mean2, max2 = block(xp1, c1, r1, oG2, 1, 8, 9, poolb_ref[1], k2)
        xp3, c3, r3, mean3, max3 = block(xp2, c2, r2, oG3, 2, 10, 11, poolb_ref[2], k3)

        # readout = sum of per-level [mean || max] global pools (lanes >= H are 0)
        r_mean = mean1 + mean2 + mean3                 # (1, L)
        r_max = max1 + max2 + max3                     # (1, L)

        # MLP: Linear(2H->H) ReLU, Linear(H->H/2) ReLU, Linear(H/2->OUT)
        # MLP-1 fused into a single dot on the lane-concat [mean || max] row.
        cat = jnp.concatenate([r_mean, r_max], axis=1)                  # (1, 2L)
        m1b, m2b, m3b = Bv[3:4, :], Bv[4:5, :], Bv[5:6, :]
        y = jnp.dot(cat, w_ref[oM1:oM1 + 2 * L, :], preferred_element_type=f32) + m1b
        y = jnp.maximum(y, 0.0)
        y = jnp.maximum(jnp.dot(y, w_ref[oM2:oM2 + L, :],
                                preferred_element_type=f32) + m2b, 0.0)
        y = jnp.dot(y, w_ref[oM3:oM3 + L, :], preferred_element_type=f32) + m3b

        # log_softmax over the OUT valid lanes; padded lanes written as 0.
        lane = lax.broadcasted_iota(jnp.int32, (1, L), 1)
        ym = jnp.where(lane < OUT, y, NEG)
        ymax = jnp.max(ym, axis=1, keepdims=True)
        lse = ymax + jnp.log(jnp.sum(jnp.exp(ym - ymax), axis=1, keepdims=True))
        o_ref[...] = jnp.where(lane < OUT, ym - lse, 0.0)

    nW, nB = w_big.shape[0], b_big.shape[0]
    cost = pl.CostEstimate(
        flops=int(G * (3 * (2 * N * L * L + 4 * N * N * L) + 8 * L * L)),
        transcendentals=int(G * (6 * N + L)),
        bytes_accessed=int(4 * (x_pad.size + adj_f.size + w_big.size + b_big.size
                                + pool_b.size + G * L)),
    )

    # TODO(synk): at large N replace the O(N^2) rank matrix with a thresholded top-k
    #             and move the dense adjacency to memory_space=pl.ANY with tiled DMA.
    out = pl.pallas_call(
        kernel,
        grid=(G,),
        in_specs=[
            pl.BlockSpec((None, N, L), lambda g: (g, 0, 0)),   # x (per graph)
            pl.BlockSpec((None, N, N), lambda g: (g, 0, 0)),   # adj (per graph)
            pl.BlockSpec((nW, L), lambda g: (0, 0)),           # packed weights (resident)
            pl.BlockSpec((nB, L), lambda g: (0, 0)),           # packed biases (resident)
            pl.BlockSpec(memory_space=pltpu.MemorySpace.SMEM), # pool score biases
        ],
        out_specs=pl.BlockSpec((None, 1, L), lambda g: (g, 0, 0)),
        out_shape=jax.ShapeDtypeStruct((G, 1, L), f32),
        compiler_params=pltpu.CompilerParams(dimension_semantics=("parallel",)),
        cost_estimate=cost,
    )(x_pad, adj_f, w_big, b_big, pool_b)

    return out[:, 0, :OUT]


def sagpool_classifier_forward(x, adj, params):
    """Single-graph forward (matches the PyTorch module). Returns (1, OUT)."""
    return sagpool_classifier_forward_batched(x[None], adj[None], params)


def init_params(key, Fin, H, OUT):
    ks = jax.random.split(key, 32)
    f32 = jnp.float32

    def w(k, fan_in, shape):
        return jax.random.normal(k, shape, f32) / jnp.sqrt(jnp.asarray(fan_in, f32))

    def b(k, shape):
        return 0.1 * jax.random.normal(k, shape, f32)

    p = {}
    p["gcn1_w"] = w(ks[0], Fin, (Fin, H));    p["gcn1_b"] = b(ks[1], (1, H))
    p["pool1_wrel"] = w(ks[2], H, (H, 1));    p["pool1_wroot"] = w(ks[3], H, (H, 1))
    p["pool1_b"] = b(ks[4], (1, 1))
    p["gcn2_w"] = w(ks[5], H, (H, H));        p["gcn2_b"] = b(ks[6], (1, H))
    p["pool2_wrel"] = w(ks[7], H, (H, 1));    p["pool2_wroot"] = w(ks[8], H, (H, 1))
    p["pool2_b"] = b(ks[9], (1, 1))
    p["gcn3_w"] = w(ks[10], H, (H, H));       p["gcn3_b"] = b(ks[11], (1, H))
    p["pool3_wrel"] = w(ks[12], H, (H, 1));   p["pool3_wroot"] = w(ks[13], H, (H, 1))
    p["pool3_b"] = b(ks[14], (1, 1))
    p["mlp1_w"] = w(ks[15], 2 * H, (2 * H, H));      p["mlp1_b"] = b(ks[16], (1, H))
    p["mlp2_w"] = w(ks[17], H, (H, H // 2));         p["mlp2_b"] = b(ks[18], (1, H // 2))
    p["mlp3_w"] = w(ks[19], H // 2, (H // 2, OUT));  p["mlp3_b"] = b(ks[20], (1, OUT))
    return p


if __name__ == "__main__":
    N, Fin, H, OUT = 16, 8, 32, 4   # input_dim=8, hidden_dim=32, output_dim=4, 16 nodes

    key = jax.random.PRNGKey(0)
    kx, kp, kx2 = jax.random.split(key, 3)

    # Node features
    x = jax.random.normal(kx, (N, Fin), jnp.float32)

    # Deterministic symmetric graph: ring + wrap edge + distance-4 chords, no self loops.
    idx = jnp.arange(N)
    d = jnp.abs(idx[:, None] - idx[None, :])
    adj = ((d == 1) | (d == N - 1) | (d == 4)).astype(jnp.float32)

    params = init_params(kp, Fin, H, OUT)

    # Single-graph path (module semantics).
    out = jax.block_until_ready(sagpool_classifier_forward(x, adj, params))
    assert out.shape == (1, OUT)
    assert bool(jnp.all(jnp.isfinite(out)))

    # Batched path exercising the parallel graph grid axis (2 graphs per call).
    x2 = jax.random.normal(kx2, (N, Fin), jnp.float32)
    xb = jnp.stack([x, x2], axis=0)
    adjb = jnp.stack([adj, adj], axis=0)
    outb = jax.block_until_ready(sagpool_classifier_forward_batched(xb, adjb, params))
    assert outb.shape == (2, OUT)
    assert bool(jnp.all(jnp.isfinite(outb)))
    assert bool(jnp.allclose(outb[0:1], out, atol=1e-5, rtol=1e-5))

    print("KERNEL_OK")
</pallas_src>

<mosaic_0001>
module attributes {stable_mosaic.version = 11 : i64} {
  func.func @kernel(%arg0: i32, %arg1: memref<1x16x128xf32, #tpu.memory_space<vmem>>, %arg2: memref<1x16x16xf32, #tpu.memory_space<vmem>>, %arg3: memref<896x128xf32, #tpu.memory_space<vmem>>, %arg4: memref<16x128xf32, #tpu.memory_space<vmem>>, %arg5: memref<3xf32, #tpu.memory_space<smem>>, %arg6: memref<1x1x128xf32, #tpu.memory_space<vmem>>) attributes {dimension_semantics = [#tpu.dimension_semantics<parallel>], iteration_bounds = array<i64: 1>, scalar_prefetch = 0 : i64, scratch_operands = 0 : i64, tpu.core_type = #tpu.core_type<tc>, window_params = [{transform_indices = @transform_0, window_bounds = array<i64: 1, 16, 128>}, {transform_indices = @transform_1, window_bounds = array<i64: 1, 16, 16>}, {pipeline_mode = #tpu.pipeline_mode<synchronous>, transform_indices = @transform_2, window_bounds = array<i64: 896, 128>}, {pipeline_mode = #tpu.pipeline_mode<synchronous>, transform_indices = @transform_3, window_bounds = array<i64: 16, 128>}, {transform_indices = @transform_4, window_bounds = array<i64: 3>}, {transform_indices = @transform_5, window_bounds = array<i64: 1, 1, 128>}]} {
    %c0 = arith.constant 0 : index
    %c0_0 = arith.constant 0 : index
    %c0_1 = arith.constant 0 : index
    %0 = vector.load %arg1[%c0, %c0_0, %c0_1] : memref<1x16x128xf32, #tpu.memory_space<vmem>>, vector<1x16x128xf32>
    %1 = vector.shape_cast %0 : vector<1x16x128xf32> to vector<16x128xf32>
    %c0_2 = arith.constant 0 : index
    %c0_3 = arith.constant 0 : index
    %c0_4 = arith.constant 0 : index
    %2 = vector.load %arg2[%c0_2, %c0_3, %c0_4] : memref<1x16x16xf32, #tpu.memory_space<vmem>>, vector<1x16x16xf32>
    %3 = vector.shape_cast %2 : vector<1x16x16xf32> to vector<16x16xf32>
    %c0_5 = arith.constant 0 : index
    %c0_6 = arith.constant 0 : index
    %4 = vector.load %arg4[%c0_5, %c0_6] : memref<16x128xf32, #tpu.memory_space<vmem>>, vector<16x128xf32>
    %5 = tpu.iota {dimensions = array<i32: 0>} : vector<16x16xi32>
    %6 = tpu.iota {dimensions = array<i32: 1>} : vector<16x16xi32>
    %7 = arith.cmpi eq, %5, %6 : vector<16x16xi32>
    %8 = arith.extui %7 : vector<16x16xi1> to vector<16x16xi32>
    %9 = arith.sitofp %8 : vector<16x16xi32> to vector<16x16xf32>
    %cst = arith.constant 1.000000e+00 : f32
    %10 = vector.broadcast %cst : f32 to vector<16x1xf32>
    %cst_7 = arith.constant 1.000000e+00 : f32
    %11 = vector.broadcast %cst_7 : f32 to vector<1x16xf32>
    %c0_8 = arith.constant 0 : index
    %12 = memref.load %arg5[%c0_8] : memref<3xf32, #tpu.memory_space<smem>>
    %c0_9 = arith.constant 0 : index
    %c0_10 = arith.constant 0 : index
    %13 = vector.load %arg3[%c0_9, %c0_10] : memref<896x128xf32, #tpu.memory_space<vmem>>, vector<128x128xf32>
    %14 = vector.extract_strided_slice %4 {offsets = [0, 0], sizes = [1, 128], strides = [1, 1]} : vector<16x128xf32> to vector<1x128xf32>
    %15 = vector.extract_strided_slice %4 {offsets = [6, 0], sizes = [1, 128], strides = [1, 1]} : vector<16x128xf32> to vector<1x128xf32>
    %16 = vector.extract_strided_slice %4 {offsets = [7, 0], sizes = [1, 128], strides = [1, 1]} : vector<16x128xf32> to vector<1x128xf32>
    %17 = vector.broadcast %11 : vector<1x16xf32> to vector<16x16xf32>
    %18 = arith.mulf %3, %17 : vector<16x16xf32>
    %cst_11 = arith.constant dense<0.000000e+00> : vector<16xf32>
    %19 = vector.multi_reduction <add>, %18, %cst_11 [1] : vector<16x16xf32> to vector<16xf32>
    %20 = vector.shape_cast %19 : vector<16xf32> to vector<16x1xf32>
    %21 = arith.mulf %10, %20 : vector<16x1xf32>
    %22 = arith.addf %21, %10 : vector<16x1xf32>
    %cst_12 = arith.constant 1.000000e+00 : f32
    %23 = vector.broadcast %cst_12 : f32 to vector<16x1xf32>
    %24 = arith.maximumf %22, %23 : vector<16x1xf32>
    %25 = math.rsqrt %24 : vector<16x1xf32>
    %26 = arith.mulf %10, %25 : vector<16x1xf32>
    %cst_13 = arith.constant dense<0.000000e+00> : vector<16x128xf32>
    %27 = tpu.matmul %1, %13, %cst_13 {dimension_numbers = #tpu.dot_dimension_numbers<[1], [0], [0], [1], [0, 0, 1, 1], [], []>} : vector<16x128xf32>, vector<128x128xf32>, vector<16x128xf32> -> vector<16x128xf32>
    %28 = vector.broadcast %26 : vector<16x1xf32> to vector<16x128xf32>
    %29 = arith.mulf %28, %27 : vector<16x128xf32>
    %cst_14 = arith.constant dense<0.000000e+00> : vector<16x128xf32>
    %30 = tpu.matmul %3, %29, %cst_14 {dimension_numbers = #tpu.dot_dimension_numbers<[1], [0], [0], [1], [0, 0, 1, 1], [], []>} : vector<16x16xf32>, vector<16x128xf32>, vector<16x128xf32> -> vector<16x128xf32>
    %31 = arith.addf %30, %29 : vector<16x128xf32>
    %32 = vector.broadcast %26 : vector<16x1xf32> to vector<16x128xf32>
    %33 = arith.mulf %32, %31 : vector<16x128xf32>
    %34 = vector.broadcast %10 : vector<16x1xf32> to vector<16x128xf32>
    %35 = vector.broadcast %14 : vector<1x128xf32> to vector<16x128xf32>
    %36 = arith.mulf %34, %35 : vector<16x128xf32>
    %37 = arith.addf %33, %36 : vector<16x128xf32>
    %cst_15 = arith.constant 0.000000e+00 : f32
    %38 = vector.broadcast %cst_15 : f32 to vector<16x128xf32>
    %39 = arith.maximumf %37, %38 : vector<16x128xf32>
    %cst_16 = arith.constant dense<0.000000e+00> : vector<16x128xf32>
    %40 = tpu.matmul %3, %39, %cst_16 {dimension_numbers = #tpu.dot_dimension_numbers<[1], [0], [0], [1], [0, 0, 1, 1], [], []>} : vector<16x16xf32>, vector<16x128xf32>, vector<16x128xf32> -> vector<16x128xf32>
    %41 = vector.broadcast %15 : vector<1x128xf32> to vector<16x128xf32>
    %42 = arith.mulf %40, %41 : vector<16x128xf32>
    %43 = vector.broadcast %16 : vector<1x128xf32> to vector<16x128xf32>
    %44 = arith.mulf %39, %43 : vector<16x128xf32>
    %45 = arith.addf %42, %44 : vector<16x128xf32>
    %cst_17 = arith.constant dense<0.000000e+00> : vector<16xf32>
    %46 = vector.multi_reduction <add>, %45, %cst_17 [1] : vector<16x128xf32> to vector<16xf32>
    %47 = vector.shape_cast %46 : vector<16xf32> to vector<16x1xf32>
    %48 = vector.broadcast %12 : f32 to vector<16x1xf32>
    %49 = arith.addf %47, %48 : vector<16x1xf32>
    %50 = math.tanh %49 : vector<16x1xf32>
    %cst_18 = arith.constant 0.000000e+00 : f32
    %51 = vector.broadcast %cst_18 : f32 to vector<16x1xf32>
    %52 = arith.cmpf ogt, %10, %51 : vector<16x1xf32>
    %cst_19 = arith.constant -1.000000e+30 : f32
    %53 = vector.broadcast %cst_19 : f32 to vector<16x1xf32>
    %54 = arith.select %52, %50, %53 : vector<16x1xi1>, vector<16x1xf32>
    %55 = vector.broadcast %54 : vector<16x1xf32> to vector<16x16xf32>
    %56 = arith.mulf %55, %9 : vector<16x16xf32>
    %cst_20 = arith.constant dense<0.000000e+00> : vector<16xf32>
    %57 = vector.multi_reduction <add>, %56, %cst_20 [0] : vector<16x16xf32> to vector<16xf32>
    %58 = vector.shape_cast %57 : vector<16xf32> to vector<1x16xf32>
    %59 = vector.shape_cast %54 : vector<16x1xf32> to vector<16x1xf32>
    %60 = vector.broadcast %59 : vector<16x1xf32> to vector<16x16xf32>
    %61 = vector.shape_cast %58 : vector<1x16xf32> to vector<1x16xf32>
    %62 = vector.broadcast %61 : vector<1x16xf32> to vector<16x16xf32>
    %63 = arith.cmpf ogt, %62, %60 : vector<16x16xf32>
    %64 = arith.cmpf oeq, %62, %60 : vector<16x16xf32>
    %65 = arith.cmpi slt, %6, %5 : vector<16x16xi32>
    %66 = arith.andi %64, %65 : vector<16x16xi1>
    %67 = arith.ori %63, %66 : vector<16x16xi1>
    %68 = arith.extui %67 : vector<16x16xi1> to vector<16x16xi32>
    %69 = arith.sitofp %68 : vector<16x16xi32> to vector<16x16xf32>
    %cst_21 = arith.constant dense<0.000000e+00> : vector<16xf32>
    %70 = vector.multi_reduction <add>, %69, %cst_21 [1] : vector<16x16xf32> to vector<16xf32>
    %71 = vector.shape_cast %70 : vector<16xf32> to vector<16x1xf32>
    %cst_22 = arith.constant 0.000000e+00 : f32
    %72 = vector.broadcast %cst_22 : f32 to vector<16x1xf32>
    %73 = arith.cmpf ogt, %10, %72 : vector<16x1xf32>
    %cst_23 = arith.constant 8.000000e+00 : f32
    %74 = vector.broadcast %cst_23 : f32 to vector<16x1xf32>
    %75 = arith.cmpf olt, %71, %74 : vector<16x1xf32>
    %76 = arith.andi %73, %75 : vector<16x1xi1>
    %cst_24 = arith.constant 1.000000e+00 : f32
    %cst_25 = arith.constant 0.000000e+00 : f32
    %77 = vector.broadcast %cst_24 : f32 to vector<16x1xf32>
    %78 = vector.broadcast %cst_25 : f32 to vector<16x1xf32>
    %79 = arith.select %76, %77, %78 : vector<16x1xi1>, vector<16x1xf32>
    %80 = vector.broadcast %79 : vector<16x1xf32> to vector<16x16xf32>
    %81 = arith.mulf %80, %9 : vector<16x16xf32>
    %cst_26 = arith.constant dense<0.000000e+00> : vector<16xf32>
    %82 = vector.multi_reduction <add>, %81, %cst_26 [0] : vector<16x16xf32> to vector<16xf32>
    %83 = vector.shape_cast %82 : vector<16xf32> to vector<1x16xf32>
    %84 = vector.broadcast %50 : vector<16x1xf32> to vector<16x128xf32>
    %85 = arith.mulf %39, %84 : vector<16x128xf32>
    %86 = vector.broadcast %79 : vector<16x1xf32> to vector<16x128xf32>
    %87 = arith.mulf %85, %86 : vector<16x128xf32>
    %cst_27 = arith.constant dense<0.000000e+00> : vector<128xf32>
    %88 = vector.multi_reduction <add>, %87, %cst_27 [0] : vector<16x128xf32> to vector<128xf32>
    %89 = vector.shape_cast %88 : vector<128xf32> to vector<1x128xf32>
    %cst_28 = arith.constant 8.000000e+00 : f32
    %90 = vector.broadcast %cst_28 : f32 to vector<1x128xf32>
    %91 = arith.divf %89, %90 : vector<1x128xf32>
    %cst_29 = arith.constant 0.000000e+00 : f32
    %92 = vector.broadcast %cst_29 : f32 to vector<16x1xf32>
    %93 = arith.cmpf ogt, %79, %92 : vector<16x1xf32>
    %cst_30 = arith.constant -1.000000e+30 : f32
    %94 = vector.shape_cast %93 : vector<16x1xi1> to vector<16x1xi1>
    %95 = vector.broadcast %94 : vector<16x1xi1> to vector<16x128xi1>
    %96 = vector.broadcast %cst_30 : f32 to vector<16x128xf32>
    %97 = arith.select %95, %85, %96 : vector<16x128xi1>, vector<16x128xf32>
    %cst_31 = arith.constant dense<0xFF800000> : vector<128xf32>
    %98 = vector.multi_reduction <maximumf>, %97, %cst_31 [0] : vector<16x128xf32> to vector<128xf32>
    %99 = vector.shape_cast %98 : vector<128xf32> to vector<1x128xf32>
    %c1 = arith.constant 1 : index
    %100 = memref.load %arg5[%c1] : memref<3xf32, #tpu.memory_space<smem>>
    %c128 = arith.constant 128 : index
    %c0_32 = arith.constant 0 : index
    %101 = vector.load %arg3[%c128, %c0_32] : memref<896x128xf32, #tpu.memory_space<vmem>>, vector<128x128xf32>
    %102 = vector.extract_strided_slice %4 {offsets = [1, 0], sizes = [1, 128], strides = [1, 1]} : vector<16x128xf32> to vector<1x128xf32>
    %103 = vector.extract_strided_slice %4 {offsets = [8, 0], sizes = [1, 128], strides = [1, 1]} : vector<16x128xf32> to vector<1x128xf32>
    %104 = vector.extract_strided_slice %4 {offsets = [9, 0], sizes = [1, 128], strides = [1, 1]} : vector<16x128xf32> to vector<1x128xf32>
    %105 = vector.broadcast %83 : vector<1x16xf32> to vector<16x16xf32>
    %106 = arith.mulf %3, %105 : vector<16x16xf32>
    %cst_33 = arith.constant dense<0.000000e+00> : vector<16xf32>
    %107 = vector.multi_reduction <add>, %106, %cst_33 [1] : vector<16x16xf32> to vector<16xf32>
    %108 = vector.shape_cast %107 : vector<16xf32> to vector<16x1xf32>
    %109 = arith.mulf %79, %108 : vector<16x1xf32>
    %110 = arith.addf %109, %79 : vector<16x1xf32>
    %cst_34 = arith.constant 1.000000e+00 : f32
    %111 = vector.broadcast %cst_34 : f32 to vector<16x1xf32>
    %112 = arith.maximumf %110, %111 : vector<16x1xf32>
    %113 = math.rsqrt %112 : vector<16x1xf32>
    %114 = arith.mulf %79, %113 : vector<16x1xf32>
    %cst_35 = arith.constant dense<0.000000e+00> : vector<16x128xf32>
    %115 = tpu.matmul %85, %101, %cst_35 {dimension_numbers = #tpu.dot_dimension_numbers<[1], [0], [0], [1], [0, 0, 1, 1], [], []>} : vector<16x128xf32>, vector<128x128xf32>, vector<16x128xf32> -> vector<16x128xf32>
    %116 = vector.broadcast %114 : vector<16x1xf32> to vector<16x128xf32>
    %117 = arith.mulf %116, %115 : vector<16x128xf32>
    %cst_36 = arith.constant dense<0.000000e+00> : vector<16x128xf32>
    %118 = tpu.matmul %3, %117, %cst_36 {dimension_numbers = #tpu.dot_dimension_numbers<[1], [0], [0], [1], [0, 0, 1, 1], [], []>} : vector<16x16xf32>, vector<16x128xf32>, vector<16x128xf32> -> vector<16x128xf32>
    %119 = arith.addf %118, %117 : vector<16x128xf32>
    %120 = vector.broadcast %114 : vector<16x1xf32> to vector<16x128xf32>
    %121 = arith.mulf %120, %119 : vector<16x128xf32>
    %122 = vector.broadcast %79 : vector<16x1xf32> to vector<16x128xf32>
    %123 = vector.broadcast %102 : vector<1x128xf32> to vector<16x128xf32>
    %124 = arith.mulf %122, %123 : vector<16x128xf32>
    %125 = arith.addf %121, %124 : vector<16x128xf32>
    %cst_37 = arith.constant 0.000000e+00 : f32
    %126 = vector.broadcast %cst_37 : f32 to vector<16x128xf32>
    %127 = arith.maximumf %125, %126 : vector<16x128xf32>
    %cst_38 = arith.constant dense<0.000000e+00> : vector<16x128xf32>
    %128 = tpu.matmul %3, %127, %cst_38 {dimension_numbers = #tpu.dot_dimension_numbers<[1], [0], [0], [1], [0, 0, 1, 1], [], []>} : vector<16x16xf32>, vector<16x128xf32>, vector<16x128xf32> -> vector<16x128xf32>
    %129 = vector.broadcast %103 : vector<1x128xf32> to vector<16x128xf32>
    %130 = arith.mulf %128, %129 : vector<16x128xf32>
    %131 = vector.broadcast %104 : vector<1x128xf32> to vector<16x128xf32>
    %132 = arith.mulf %127, %131 : vector<16x128xf32>
    %133 = arith.addf %130, %132 : vector<16x128xf32>
    %cst_39 = arith.constant dense<0.000000e+00> : vector<16xf32>
    %134 = vector.multi_reduction <add>, %133, %cst_39 [1] : vector<16x128xf32> to vector<16xf32>
    %135 = vector.shape_cast %134 : vector<16xf32> to vector<16x1xf32>
    %136 = vector.broadcast %100 : f32 to vector<16x1xf32>
    %137 = arith.addf %135, %136 : vector<16x1xf32>
    %138 = math.tanh %137 : vector<16x1xf32>
    %cst_40 = arith.constant 0.000000e+00 : f32
    %139 = vector.broadcast %cst_40 : f32 to vector<16x1xf32>
    %140 = arith.cmpf ogt, %79, %139 : vector<16x1xf32>
    %cst_41 = arith.constant -1.000000e+30 : f32
    %141 = vector.broadcast %cst_41 : f32 to vector<16x1xf32>
    %142 = arith.select %140, %138, %141 : vector<16x1xi1>, vector<16x1xf32>
    %143 = vector.broadcast %142 : vector<16x1xf32> to vector<16x16xf32>
    %144 = arith.mulf %143, %9 : vector<16x16xf32>
    %cst_42 = arith.constant dense<0.000000e+00> : vector<16xf32>
    %145 = vector.multi_reduction <add>, %144, %cst_42 [0] : vector<16x16xf32> to vector<16xf32>
    %146 = vector.shape_cast %145 : vector<16xf32> to vector<1x16xf32>
    %147 = vector.shape_cast %142 : vector<16x1xf32> to vector<16x1xf32>
    %148 = vector.broadcast %147 : vector<16x1xf32> to vector<16x16xf32>
    %149 = vector.shape_cast %146 : vector<1x16xf32> to vector<1x16xf32>
    %150 = vector.broadcast %149 : vector<1x16xf32> to vector<16x16xf32>
    %151 = arith.cmpf ogt, %150, %148 : vector<16x16xf32>
    %152 = arith.cmpf oeq, %150, %148 : vector<16x16xf32>
    %153 = arith.cmpi slt, %6, %5 : vector<16x16xi32>
    %154 = arith.andi %152, %153 : vector<16x16xi1>
    %155 = arith.ori %151, %154 : vector<16x16xi1>
    %156 = arith.extui %155 : vector<16x16xi1> to vector<16x16xi32>
    %157 = arith.sitofp %156 : vector<16x16xi32> to vector<16x16xf32>
    %cst_43 = arith.constant dense<0.000000e+00> : vector<16xf32>
    %158 = vector.multi_reduction <add>, %157, %cst_43 [1] : vector<16x16xf32> to vector<16xf32>
    %159 = vector.shape_cast %158 : vector<16xf32> to vector<16x1xf32>
    %cst_44 = arith.constant 0.000000e+00 : f32
    %160 = vector.broadcast %cst_44 : f32 to vector<16x1xf32>
    %161 = arith.cmpf ogt, %79, %160 : vector<16x1xf32>
    %cst_45 = arith.constant 4.000000e+00 : f32
    %162 = vector.broadcast %cst_45 : f32 to vector<16x1xf32>
    %163 = arith.cmpf olt, %159, %162 : vector<16x1xf32>
    %164 = arith.andi %161, %163 : vector<16x1xi1>
    %cst_46 = arith.constant 1.000000e+00 : f32
    %cst_47 = arith.constant 0.000000e+00 : f32
    %165 = vector.broadcast %cst_46 : f32 to vector<16x1xf32>
    %166 = vector.broadcast %cst_47 : f32 to vector<16x1xf32>
    %167 = arith.select %164, %165, %166 : vector<16x1xi1>, vector<16x1xf32>
    %168 = vector.broadcast %167 : vector<16x1xf32> to vector<16x16xf32>
    %169 = arith.mulf %168, %9 : vector<16x16xf32>
    %cst_48 = arith.constant dense<0.000000e+00> : vector<16xf32>
    %170 = vector.multi_reduction <add>, %169, %cst_48 [0] : vector<16x16xf32> to vector<16xf32>
    %171 = vector.shape_cast %170 : vector<16xf32> to vector<1x16xf32>
    %172 = vector.broadcast %138 : vector<16x1xf32> to vector<16x128xf32>
    %173 = arith.mulf %127, %172 : vector<16x128xf32>
    %174 = vector.broadcast %167 : vector<16x1xf32> to vector<16x128xf32>
    %175 = arith.mulf %173, %174 : vector<16x128xf32>
    %cst_49 = arith.constant dense<0.000000e+00> : vector<128xf32>
    %176 = vector.multi_reduction <add>, %175, %cst_49 [0] : vector<16x128xf32> to vector<128xf32>
    %177 = vector.shape_cast %176 : vector<128xf32> to vector<1x128xf32>
    %cst_50 = arith.constant 4.000000e+00 : f32
    %178 = vector.broadcast %cst_50 : f32 to vector<1x128xf32>
    %179 = arith.divf %177, %178 : vector<1x128xf32>
    %cst_51 = arith.constant 0.000000e+00 : f32
    %180 = vector.broadcast %cst_51 : f32 to vector<16x1xf32>
    %181 = arith.cmpf ogt, %167, %180 : vector<16x1xf32>
    %cst_52 = arith.constant -1.000000e+30 : f32
    %182 = vector.shape_cast %181 : vector<16x1xi1> to vector<16x1xi1>
    %183 = vector.broadcast %182 : vector<16x1xi1> to vector<16x128xi1>
    %184 = vector.broadcast %cst_52 : f32 to vector<16x128xf32>
    %185 = arith.select %183, %173, %184 : vector<16x128xi1>, vector<16x128xf32>
    %cst_53 = arith.constant dense<0xFF800000> : vector<128xf32>
    %186 = vector.multi_reduction <maximumf>, %185, %cst_53 [0] : vector<16x128xf32> to vector<128xf32>
    %187 = vector.shape_cast %186 : vector<128xf32> to vector<1x128xf32>
    %c2 = arith.constant 2 : index
    %188 = memref.load %arg5[%c2] : memref<3xf32, #tpu.memory_space<smem>>
    %c256 = arith.constant 256 : index
    %c0_54 = arith.constant 0 : index
    %189 = vector.load %arg3[%c256, %c0_54] : memref<896x128xf32, #tpu.memory_space<vmem>>, vector<128x128xf32>
    %190 = vector.extract_strided_slice %4 {offsets = [2, 0], sizes = [1, 128], strides = [1, 1]} : vector<16x128xf32> to vector<1x128xf32>
    %191 = vector.extract_strided_slice %4 {offsets = [10, 0], sizes = [1, 128], strides = [1, 1]} : vector<16x128xf32> to vector<1x128xf32>
    %192 = vector.extract_strided_slice %4 {offsets = [11, 0], sizes = [1, 128], strides = [1, 1]} : vector<16x128xf32> to vector<1x128xf32>
    %193 = vector.broadcast %171 : vector<1x16xf32> to vector<16x16xf32>
    %194 = arith.mulf %3, %193 : vector<16x16xf32>
    %cst_55 = arith.constant dense<0.000000e+00> : vector<16xf32>
    %195 = vector.multi_reduction <add>, %194, %cst_55 [1] : vector<16x16xf32> to vector<16xf32>
    %196 = vector.shape_cast %195 : vector<16xf32> to vector<16x1xf32>
    %197 = arith.mulf %167, %196 : vector<16x1xf32>
    %198 = arith.addf %197, %167 : vector<16x1xf32>
    %cst_56 = arith.constant 1.000000e+00 : f32
    %199 = vector.broadcast %cst_56 : f32 to vector<16x1xf32>
    %200 = arith.maximumf %198, %199 : vector<16x1xf32>
    %201 = math.rsqrt %200 : vector<16x1xf32>
    %202 = arith.mulf %167, %201 : vector<16x1xf32>
    %cst_57 = arith.constant dense<0.000000e+00> : vector<16x128xf32>
    %203 = tpu.matmul %173, %189, %cst_57 {dimension_numbers = #tpu.dot_dimension_numbers<[1], [0], [0], [1], [0, 0, 1, 1], [], []>} : vector<16x128xf32>, vector<128x128xf32>, vector<16x128xf32> -> vector<16x128xf32>
    %204 = vector.broadcast %202 : vector<16x1xf32> to vector<16x128xf32>
    %205 = arith.mulf %204, %203 : vector<16x128xf32>
    %cst_58 = arith.constant dense<0.000000e+00> : vector<16x128xf32>
    %206 = tpu.matmul %3, %205, %cst_58 {dimension_numbers = #tpu.dot_dimension_numbers<[1], [0], [0], [1], [0, 0, 1, 1], [], []>} : vector<16x16xf32>, vector<16x128xf32>, vector<16x128xf32> -> vector<16x128xf32>
    %207 = arith.addf %206, %205 : vector<16x128xf32>
    %208 = vector.broadcast %202 : vector<16x1xf32> to vector<16x128xf32>
    %209 = arith.mulf %208, %207 : vector<16x128xf32>
    %210 = vector.broadcast %167 : vector<16x1xf32> to vector<16x128xf32>
    %211 = vector.broadcast %190 : vector<1x128xf32> to vector<16x128xf32>
    %212 = arith.mulf %210, %211 : vector<16x128xf32>
    %213 = arith.addf %209, %212 : vector<16x128xf32>
    %cst_59 = arith.constant 0.000000e+00 : f32
    %214 = vector.broadcast %cst_59 : f32 to vector<16x128xf32>
    %215 = arith.maximumf %213, %214 : vector<16x128xf32>
    %cst_60 = arith.constant dense<0.000000e+00> : vector<16x128xf32>
    %216 = tpu.matmul %3, %215, %cst_60 {dimension_numbers = #tpu.dot_dimension_numbers<[1], [0], [0], [1], [0, 0, 1, 1], [], []>} : vector<16x16xf32>, vector<16x128xf32>, vector<16x128xf32> -> vector<16x128xf32>
    %217 = vector.broadcast %191 : vector<1x128xf32> to vector<16x128xf32>
    %218 = arith.mulf %216, %217 : vector<16x128xf32>
    %219 = vector.broadcast %192 : vector<1x128xf32> to vector<16x128xf32>
    %220 = arith.mulf %215, %219 : vector<16x128xf32>
    %221 = arith.addf %218, %220 : vector<16x128xf32>
    %cst_61 = arith.constant dense<0.000000e+00> : vector<16xf32>
    %222 = vector.multi_reduction <add>, %221, %cst_61 [1] : vector<16x128xf32> to vector<16xf32>
    %223 = vector.shape_cast %222 : vector<16xf32> to vector<16x1xf32>
    %224 = vector.broadcast %188 : f32 to vector<16x1xf32>
    %225 = arith.addf %223, %224 : vector<16x1xf32>
    %226 = math.tanh %225 : vector<16x1xf32>
    %cst_62 = arith.constant 0.000000e+00 : f32
    %227 = vector.broadcast %cst_62 : f32 to vector<16x1xf32>
    %228 = arith.cmpf ogt, %167, %227 : vector<16x1xf32>
    %cst_63 = arith.constant -1.000000e+30 : f32
    %229 = vector.broadcast %cst_63 : f32 to vector<16x1xf32>
    %230 = arith.select %228, %226, %229 : vector<16x1xi1>, vector<16x1xf32>
    %231 = vector.broadcast %230 : vector<16x1xf32> to vector<16x16xf32>
    %232 = arith.mulf %231, %9 : vector<16x16xf32>
    %cst_64 = arith.constant dense<0.000000e+00> : vector<16xf32>
    %233 = vector.multi_reduction <add>, %232, %cst_64 [0] : vector<16x16xf32> to vector<16xf32>
    %234 = vector.shape_cast %233 : vector<16xf32> to vector<1x16xf32>
    %235 = vector.shape_cast %230 : vector<16x1xf32> to vector<16x1xf32>
    %236 = vector.broadcast %235 : vector<16x1xf32> to vector<16x16xf32>
    %237 = vector.shape_cast %234 : vector<1x16xf32> to vector<1x16xf32>
    %238 = vector.broadcast %237 : vector<1x16xf32> to vector<16x16xf32>
    %239 = arith.cmpf ogt, %238, %236 : vector<16x16xf32>
    %240 = arith.cmpf oeq, %238, %236 : vector<16x16xf32>
    %241 = arith.cmpi slt, %6, %5 : vector<16x16xi32>
    %242 = arith.andi %240, %241 : vector<16x16xi1>
    %243 = arith.ori %239, %242 : vector<16x16xi1>
    %244 = arith.extui %243 : vector<16x16xi1> to vector<16x16xi32>
    %245 = arith.sitofp %244 : vector<16x16xi32> to vector<16x16xf32>
    %cst_65 = arith.constant dense<0.000000e+00> : vector<16xf32>
    %246 = vector.multi_reduction <add>, %245, %cst_65 [1] : vector<16x16xf32> to vector<16xf32>
    %247 = vector.shape_cast %246 : vector<16xf32> to vector<16x1xf32>
    %cst_66 = arith.constant 0.000000e+00 : f32
    %248 = vector.broadcast %cst_66 : f32 to vector<16x1xf32>
    %249 = arith.cmpf ogt, %167, %248 : vector<16x1xf32>
    %cst_67 = arith.constant 2.000000e+00 : f32
    %250 = vector.broadcast %cst_67 : f32 to vector<16x1xf32>
    %251 = arith.cmpf olt, %247, %250 : vector<16x1xf32>
    %252 = arith.andi %249, %251 : vector<16x1xi1>
    %cst_68 = arith.constant 1.000000e+00 : f32
    %cst_69 = arith.constant 0.000000e+00 : f32
    %253 = vector.broadcast %cst_68 : f32 to vector<16x1xf32>
    %254 = vector.broadcast %cst_69 : f32 to vector<16x1xf32>
    %255 = arith.select %252, %253, %254 : vector<16x1xi1>, vector<16x1xf32>
    %256 = vector.broadcast %226 : vector<16x1xf32> to vector<16x128xf32>
    %257 = arith.mulf %215, %256 : vector<16x128xf32>
    %258 = vector.broadcast %255 : vector<16x1xf32> to vector<16x128xf32>
    %259 = arith.mulf %257, %258 : vector<16x128xf32>
    %cst_70 = arith.constant dense<0.000000e+00> : vector<128xf32>
    %260 = vector.multi_reduction <add>, %259, %cst_70 [0] : vector<16x128xf32> to vector<128xf32>
    %261 = vector.shape_cast %260 : vector<128xf32> to vector<1x128xf32>
    %cst_71 = arith.constant 2.000000e+00 : f32
    %262 = vector.broadcast %cst_71 : f32 to vector<1x128xf32>
    %263 = arith.divf %261, %262 : vector<1x128xf32>
    %cst_72 = arith.constant 0.000000e+00 : f32
    %264 = vector.broadcast %cst_72 : f32 to vector<16x1xf32>
    %265 = arith.cmpf ogt, %255, %264 : vector<16x1xf32>
    %cst_73 = arith.constant -1.000000e+30 : f32
    %266 = vector.shape_cast %265 : vector<16x1xi1> to vector<16x1xi1>
    %267 = vector.broadcast %266 : vector<16x1xi1> to vector<16x128xi1>
    %268 = vector.broadcast %cst_73 : f32 to vector<16x128xf32>
    %269 = arith.select %267, %257, %268 : vector<16x128xi1>, vector<16x128xf32>
    %cst_74 = arith.constant dense<0xFF800000> : vector<128xf32>
    %270 = vector.multi_reduction <maximumf>, %269, %cst_74 [0] : vector<16x128xf32> to vector<128xf32>
    %271 = vector.shape_cast %270 : vector<128xf32> to vector<1x128xf32>
    %272 = arith.addf %91, %179 : vector<1x128xf32>
    %273 = arith.addf %272, %263 : vector<1x128xf32>
    %274 = arith.addf %99, %187 : vector<1x128xf32>
    %275 = arith.addf %274, %271 : vector<1x128xf32>
    %276 = tpu.concatenate %273, %275 in 1 : vector<1x128xf32>, vector<1x128xf32> -> vector<1x256xf32>
    %277 = vector.extract_strided_slice %4 {offsets = [3, 0], sizes = [1, 128], strides = [1, 1]} : vector<16x128xf32> to vector<1x128xf32>
    %278 = vector.extract_strided_slice %4 {offsets = [4, 0], sizes = [1, 128], strides = [1, 1]} : vector<16x128xf32> to vector<1x128xf32>
    %279 = vector.extract_strided_slice %4 {offsets = [5, 0], sizes = [1, 128], strides = [1, 1]} : vector<16x128xf32> to vector<1x128xf32>
    %c384 = arith.constant 384 : index
    %c0_75 = arith.constant 0 : index
    %280 = vector.load %arg3[%c384, %c0_75] : memref<896x128xf32, #tpu.memory_space<vmem>>, vector<256x128xf32>
    %cst_76 = arith.constant dense<0.000000e+00> : vector<1x128xf32>
    %281 = tpu.matmul %276, %280, %cst_76 {dimension_numbers = #tpu.dot_dimension_numbers<[1], [0], [0], [1], [0, 0, 1, 1], [], []>} : vector<1x256xf32>, vector<256x128xf32>, vector<1x128xf32> -> vector<1x128xf32>
    %282 = arith.addf %281, %277 : vector<1x128xf32>
    %cst_77 = arith.constant 0.000000e+00 : f32
    %283 = vector.broadcast %cst_77 : f32 to vector<1x128xf32>
    %284 = arith.maximumf %282, %283 : vector<1x128xf32>
    %c640 = arith.constant 640 : index
    %c0_78 = arith.constant 0 : index
    %285 = vector.load %arg3[%c640, %c0_78] : memref<896x128xf32, #tpu.memory_space<vmem>>, vector<128x128xf32>
    %cst_79 = arith.constant dense<0.000000e+00> : vector<1x128xf32>
    %286 = tpu.matmul %284, %285, %cst_79 {dimension_numbers = #tpu.dot_dimension_numbers<[1], [0], [0], [1], [0, 0, 1, 1], [], []>} : vector<1x128xf32>, vector<128x128xf32>, vector<1x128xf32> -> vector<1x128xf32>
    %287 = arith.addf %286, %278 : vector<1x128xf32>
    %cst_80 = arith.constant 0.000000e+00 : f32
    %288 = vector.broadcast %cst_80 : f32 to vector<1x128xf32>
    %289 = arith.maximumf %287, %288 : vector<1x128xf32>
    %c768 = arith.constant 768 : index
    %c0_81 = arith.constant 0 : index
    %290 = vector.load %arg3[%c768, %c0_81] : memref<896x128xf32, #tpu.memory_space<vmem>>, vector<128x128xf32>
    %cst_82 = arith.constant dense<0.000000e+00> : vector<1x128xf32>
    %291 = tpu.matmul %289, %290, %cst_82 {dimension_numbers = #tpu.dot_dimension_numbers<[1], [0], [0], [1], [0, 0, 1, 1], [], []>} : vector<1x128xf32>, vector<128x128xf32>, vector<1x128xf32> -> vector<1x128xf32>
    %292 = arith.addf %291, %279 : vector<1x128xf32>
    %293 = tpu.iota {dimensions = array<i32: 1>} : vector<1x128xi32>
    %c4_i32 = arith.constant 4 : i32
    %294 = vector.broadcast %c4_i32 : i32 to vector<1x128xi32>
    %295 = arith.cmpi slt, %293, %294 : vector<1x128xi32>
    %cst_83 = arith.constant -1.000000e+30 : f32
    %296 = vector.broadcast %cst_83 : f32 to vector<1x128xf32>
    %297 = arith.select %295, %292, %296 : vector<1x128xi1>, vector<1x128xf32>
    %cst_84 = arith.constant dense<0xFF800000> : vector<1xf32>
    %298 = vector.multi_reduction <maximumf>, %297, %cst_84 [1] : vector<1x128xf32> to vector<1xf32>
    %299 = vector.shape_cast %298 : vector<1xf32> to vector<1x1xf32>
    %300 = vector.broadcast %299 : vector<1x1xf32> to vector<1x128xf32>
    %301 = arith.subf %297, %300 : vector<1x128xf32>
    %302 = math.exp %301 : vector<1x128xf32>
    %cst_85 = arith.constant dense<0.000000e+00> : vector<1xf32>
    %303 = vector.multi_reduction <add>, %302, %cst_85 [1] : vector<1x128xf32> to vector<1xf32>
    %304 = vector.shape_cast %303 : vector<1xf32> to vector<1x1xf32>
    %305 = math.log %304 : vector<1x1xf32>
    %306 = arith.addf %299, %305 : vector<1x1xf32>
    %c4_i32_86 = arith.constant 4 : i32
    %307 = vector.broadcast %c4_i32_86 : i32 to vector<1x128xi32>
    %308 = arith.cmpi slt, %293, %307 : vector<1x128xi32>
    %309 = vector.broadcast %306 : vector<1x1xf32> to vector<1x128xf32>
    %310 = arith.subf %297, %309 : vector<1x128xf32>
    %cst_87 = arith.constant 0.000000e+00 : f32
    %311 = vector.broadcast %cst_87 : f32 to vector<1x128xf32>
    %312 = arith.select %308, %310, %311 : vector<1x128xi1>, vector<1x128xf32>
    %c0_88 = arith.constant 0 : index
    %c0_89 = arith.constant 0 : index
    %c0_90 = arith.constant 0 : index
    %313 = vector.load %arg6[%c0_88, %c0_89, %c0_90] : memref<1x1x128xf32, #tpu.memory_space<vmem>>, vector<1x1x128xf32>
    %314 = vector.shape_cast %313 : vector<1x1x128xf32> to vector<1x128xf32>
    %315 = vector.shape_cast %312 : vector<1x128xf32> to vector<1x1x128xf32>
    tpu.vector_store %arg6[%c0_88, %c0_89, %c0_90], %315 {strides = array<i32>} : memref<1x1x128xf32, #tpu.memory_space<vmem>>, vector<1x1x128xf32>,
    return
  }
  func.func @transform_0(%arg0: i32) -> (i32, i32, i32) {
    %c0_i32 = arith.constant 0 : i32
    %c0_i32_0 = arith.constant 0 : i32
    %c0_i32_1 = arith.constant 0 : i32
    return %arg0, %c0_i32, %c0_i32_0 : i32, i32, i32
  }
  func.func @transform_1(%arg0: i32) -> (i32, i32, i32) {
    %c0_i32 = arith.constant 0 : i32
    %c0_i32_0 = arith.constant 0 : i32
    %c0_i32_1 = arith.constant 0 : i32
    return %arg0, %c0_i32, %c0_i32_0 : i32, i32, i32
  }
  func.func @transform_2(%arg0: i32) -> (i32, i32) {
    %c0_i32 = arith.constant 0 : i32
    %c0_i32_0 = arith.constant 0 : i32
    %c0_i32_1 = arith.constant 0 : i32
    return %c0_i32, %c0_i32_0 : i32, i32
  }
  func.func @transform_3(%arg0: i32) -> (i32, i32) {
    %c0_i32 = arith.constant 0 : i32
    %c0_i32_0 = arith.constant 0 : i32
    %c0_i32_1 = arith.constant 0 : i32
    return %c0_i32, %c0_i32_0 : i32, i32
  }
  func.func @transform_4(%arg0: i32) -> i32 {
    %c0_i32 = arith.constant 0 : i32
    %c0_i32_0 = arith.constant 0 : i32
    return %c0_i32 : i32
  }
  func.func @transform_5(%arg0: i32) -> (i32, i32, i32) {
    %c0_i32 = arith.constant 0 : i32
    %c0_i32_0 = arith.constant 0 : i32
    %c0_i32_1 = arith.constant 0 : i32
    return %arg0, %c0_i32, %c0_i32_0 : i32, i32, i32
  }
}

</mosaic_0001>

<llo_original>
// kernel: tpu_custom_call.1
$region0: #{tpu_custom_call.1}
  #allocation0 [shape = 'u32[]', space=smem, size = 0x4, offset = 0x4, fixed_abs, tag = 'smem constant byte address 0x4 - core index']
  #allocation1 [shape = 'u32[72,128]{1,0:T(1,128)}', space=vmem, size = 0x9000, scoped, tag = 'internal scratch']
  %s0 = inlined_call_operand.hbm [shape: f32[1,16,128], index: 0, kind: input, shape index: {}]
  %s1 = inlined_call_operand.hbm [shape: f32[1,16,16], index: 1, kind: input, shape index: {}]
  %s2 = inlined_call_operand.hbm [shape: f32[896,128], index: 2, kind: input, shape index: {}]
  %s3 = inlined_call_operand.hbm [shape: f32[16,128], index: 3, kind: input, shape index: {}]
  %s4 = inlined_call_operand.vmem [shape: f32[3], index: 4, kind: input, shape index: {}]
  %s5 = inlined_call_operand.hbm [shape: f32[1,1,128], index: 5, kind: output, shape index: {}]
  %s6 = sld [smem:[#allocation0]]
  $region50: #{tpu_custom_call.1} parent=0
    _
  %s8 = ssub.s32 1, %s6
  %s9 = scalar_select 0, %s8, %s6
  $region1: #{tpu_custom_call.1} parent=0
    #allocation2 [shape = 'u8[8192]{0}', space=vmem, size = 0x2000, scoped, tag = 'input window, operand 0, single buffered']
    #allocation3 [shape = 's32[1]{0}', space=sflag, size = 0x4, scoped, tag = 'scoped memory for tpu_custom_call.1']
    #allocation4 [shape = 's32[1]{0}', space=sflag, size = 0x4, scoped, tag = 'scoped memory for tpu_custom_call.1']
    #allocation5 [shape = 's32[1]{0}', space=sflag, size = 0x4, scoped, tag = 'scoped memory for tpu_custom_call.1']
    #allocation6 [shape = 'u8[8192]{0}', space=vmem, size = 0x2000, scoped, tag = 'input window, operand 1, single buffered']
    #allocation7 [shape = 's32[1]{0}', space=sflag, size = 0x4, scoped, tag = 'scoped memory for tpu_custom_call.1']
    #allocation8 [shape = 'u8[458752]{0}', space=vmem, size = 0x70000, scoped, tag = 'input window, operand 2, single buffered']
    #allocation9 [shape = 'u8[8192]{0}', space=vmem, size = 0x2000, scoped, tag = 'input window, operand 3, single buffered']
    #allocation10 [shape = 's32[1]{0}', space=sflag, size = 0x4, scoped, tag = 'scoped memory for tpu_custom_call.1']
    #allocation11 [shape = 'u8[512]{0}', space=smem, size = 0x200, scoped, tag = 'input window, operand 4, single buffered']
    #allocation12 [shape = 'u8[512]{0}', space=vmem, size = 0x400, scoped, tag = 'output window, operand 0, single buffered']
    %10 = vsyncpa [#allocation3], 0
    %11 = vsyncpa [#allocation7], 0
    %12 = vsyncpa [#allocation10], 0
    %13 = vsyncpa [#allocation5], 0
    %14 = vsyncpa [#allocation4], 0
    // Predicated region
    $region2: #{tpu_custom_call.1} parent=1 // pred_check
      _
    $region3: #{tpu_custom_call.1} parent=1 // pred_check_branch
      %16 = sbr.rel (0) target = $region5
    $region4: #{tpu_custom_call.1} parent=1 // pred_region
      %18 = vsyncadd [#allocation3], 0
      %s19 = sshll.u32 %s0, 4
      %s20 = int_to_ptr.hbm [resolvable:$true] %s19
      %s21 = sshll.u32 [#allocation2], 4
      %s22 = int_to_ptr.vmem [resolvable:$true] %s21
      %27 = dma.hbm_to_vmem [thread:$0]  %s20, 256, %s22, [#allocation3], 128, 128, 8
    $region5: #{tpu_custom_call.1} parent=1 // pred_fallthru
      _
    // Predicated region
    $region6: #{tpu_custom_call.1} parent=1 // pred_check
      _
    $region7: #{tpu_custom_call.1} parent=1 // pred_check_branch
      %29 = sbr.rel (0) target = $region9
    $region8: #{tpu_custom_call.1} parent=1 // pred_region
      %31 = vsyncadd [#allocation7], 0
      %s32 = sshll.u32 %s1, 4
      %s33 = int_to_ptr.hbm [resolvable:$true] %s32
      %s34 = sshll.u32 [#allocation6], 4
      %s35 = int_to_ptr.vmem [resolvable:$true] %s34
      %40 = dma.hbm_to_vmem [thread:$0]  %s33, 256, %s35, [#allocation7], 128, 128, 8
    $region9: #{tpu_custom_call.1} parent=1 // pred_fallthru
      _
    // Predicated region
    $region10: #{tpu_custom_call.1} parent=1 // pred_check
      _
    $region11: #{tpu_custom_call.1} parent=1 // pred_check_branch
      %42 = sbr.rel (0) target = $region13
    $region12: #{tpu_custom_call.1} parent=1 // pred_region
      %44 = vsyncadd [#allocation7], 0
      %s45 = sshll.u32 %s2, 4
      %s46 = int_to_ptr.hbm [resolvable:$true] %s45
      %s47 = sshll.u32 [#allocation8], 4
      %s48 = int_to_ptr.vmem [resolvable:$true] %s47
      %53 = dma.hbm_to_vmem [thread:$0]  %s46, 14336, %s48, [#allocation7], 128, 128, 8
    $region13: #{tpu_custom_call.1} parent=1 // pred_fallthru
      _
    // Predicated region
    $region14: #{tpu_custom_call.1} parent=1 // pred_check
      _
    $region15: #{tpu_custom_call.1} parent=1 // pred_check_branch
      %55 = sbr.rel (0) target = $region17
    $region16: #{tpu_custom_call.1} parent=1 // pred_region
      %57 = vsyncadd [#allocation10], 0
      %s58 = sshll.u32 %s3, 4
      %s59 = int_to_ptr.hbm [resolvable:$true] %s58
      %s60 = sshll.u32 [#allocation9], 4
      %s61 = int_to_ptr.vmem [resolvable:$true] %s60
      %66 = dma.hbm_to_vmem [thread:$0]  %s59, 256, %s61, [#allocation10], 128, 128, 8
    $region17: #{tpu_custom_call.1} parent=1 // pred_fallthru
      _
    // Predicated region
    $region18: #{tpu_custom_call.1} parent=1 // pred_check
      _
    $region19: #{tpu_custom_call.1} parent=1 // pred_check_branch
      %68 = sbr.rel (0) target = $region21
    $region20: #{tpu_custom_call.1} parent=1 // pred_region
      %70 = vsyncadd [#allocation5], 0
      %s72 = sshll.u32 %s4, 4
      %s73 = int_to_ptr.vmem [resolvable:$true] %s72
      %75 = dma.vmem_to_smem %s73, 16, [#allocation11], [#allocation5]
    $region21: #{tpu_custom_call.1} parent=1 // pred_fallthru
      _
    // Predicated region
    $region22: #{tpu_custom_call.1} parent=1 // pred_check
      _
    $region23: #{tpu_custom_call.1} parent=1 // pred_check_branch
      %77 = sbr.rel (0) target = $region25
    $region24: #{tpu_custom_call.1} parent=1 // pred_region
      %79 = dma.done [#allocation3], 256
    $region25: #{tpu_custom_call.1} parent=1 // pred_fallthru
      _
    // Predicated region
    $region26: #{tpu_custom_call.1} parent=1 // pred_check
      _
    $region27: #{tpu_custom_call.1} parent=1 // pred_check_branch
      %81 = sbr.rel (0) target = $region29
    $region28: #{tpu_custom_call.1} parent=1 // pred_region
      %83 = dma.done [#allocation7], 256
    $region29: #{tpu_custom_call.1} parent=1 // pred_fallthru
      _
    // Predicated region
    $region30: #{tpu_custom_call.1} parent=1 // pred_check
      _
    $region31: #{tpu_custom_call.1} parent=1 // pred_check_branch
      %85 = sbr.rel (0) target = $region33
    $region32: #{tpu_custom_call.1} parent=1 // pred_region
      %87 = dma.done [#allocation7], 14336
    $region33: #{tpu_custom_call.1} parent=1 // pred_fallthru
      _
    // Predicated region
    $region34: #{tpu_custom_call.1} parent=1 // pred_check
      _
    $region35: #{tpu_custom_call.1} parent=1 // pred_check_branch
      %89 = sbr.rel (0) target = $region37
    $region36: #{tpu_custom_call.1} parent=1 // pred_region
      %91 = dma.done [#allocation10], 256
    $region37: #{tpu_custom_call.1} parent=1 // pred_fallthru
      _
    // Predicated region
    $region38: #{tpu_custom_call.1} parent=1 // pred_check
      _
    $region39: #{tpu_custom_call.1} parent=1 // pred_check_branch
      %93 = sbr.rel (0) target = $region41
    $region40: #{tpu_custom_call.1} parent=1 // pred_region
      %95 = dma.done [#allocation5], 16
    $region41: #{tpu_custom_call.1} parent=1 // pred_fallthru
      _
    %96 = sfence
    %v97 = vld [vmem:[#allocation2] sm:$0xff]
    %v98 = vld [vmem:[#allocation2 + $0x8] sm:$0xff]
    %v99 = vld [vmem:[#allocation6] sm:$0xff]
    %v100 = vld [vmem:[#allocation6 + $0x8] sm:$0xff]
    %v101 = vld [vmem:[#allocation9] sm:$0xff]
    %v102 = vld [vmem:[#allocation9 + $0x8] sm:$0xff]
    %v103 = vlaneseq
    %v104 = vshrl.u32 %v103, 7
    %v105 = vadd.s32 %v104, 8
    %v106 = vlaneseq
    %v107 = vand.u32 %v106, 127
    %vm108 = vcmp.eq.s32.totalorder %v104, %v107
    %vm109 = vcmp.eq.s32.totalorder %v105, %v107
    %v110 = vsel %vm108, 1, 0
    %v111 = vsel %vm109, 1, 0
    %v112 = vcvt.s32.f32 %v110
    %v113 = vcvt.s32.f32 %v111
    %s114 = sld [smem:[#allocation11]]
    %v115 = vld [vmem:[#allocation8] sm:$0xff]
    %v116 = vld [vmem:[#allocation8 + $0x8] sm:$0xff]
    %v117 = vld [vmem:[#allocation8 + $0x10] sm:$0xff]
    %v118 = vld [vmem:[#allocation8 + $0x18] sm:$0xff]
    %v119 = vld [vmem:[#allocation8 + $0x20] sm:$0xff]
    %v120 = vld [vmem:[#allocation8 + $0x28] sm:$0xff]
    %v121 = vld [vmem:[#allocation8 + $0x30] sm:$0xff]
    %v122 = vld [vmem:[#allocation8 + $0x38] sm:$0xff]
    %v123 = vld [vmem:[#allocation8 + $0x40] sm:$0xff]
    %v124 = vld [vmem:[#allocation8 + $0x48] sm:$0xff]
    %v125 = vld [vmem:[#allocation8 + $0x50] sm:$0xff]
    %v126 = vld [vmem:[#allocation8 + $0x58] sm:$0xff]
    %v127 = vld [vmem:[#allocation8 + $0x60] sm:$0xff]
    %v128 = vld [vmem:[#allocation8 + $0x68] sm:$0xff]
    %v129 = vld [vmem:[#allocation8 + $0x70] sm:$0xff]
    %v130 = vld [vmem:[#allocation8 + $0x78] sm:$0xff]
    %vm131 = vcmask 130048
    %v132 = vsel %vm131, %v99, 0.0
    %133 = vadd.xlane.f32.xlu0 %v132
    %v134 = vpop.xlane.xlu0 %133
    %v135 = vsel %vm131, %v100, 0.0
    %136 = vadd.xlane.f32.xlu0 %v135
    %v137 = vpop.xlane.xlu0 %136
    %v138 = vadd.f32 %v134, 1.0
    %v139 = vadd.f32 %v137, 1.0
    %v140 = vmax.f32 %v138, 1.0
    %v141 = vmax.f32 %v139, 1.0
    %v142 = vrsqrt.pop %v140
    %v143 = vmul.f32 %v142, %v140
    %v144 = vmul.f32 %v143, %v142
    %v145 = vmul.f32 0.5, %v144
    %v146 = vsub.f32 1.5, %v145
    %v147 = vmul.f32 %v142, %v146
    %vm148 = vweird.f32 %v140
    %vm149 = vweird.f32 %v142
    %vm150 = vmor %vm148, %vm149
    %v151 = vsel %vm150, %v142, %v147
    %v152 = vrsqrt.pop %v141
    %v153 = vmul.f32 %v152, %v141
    %v154 = vmul.f32 %v153, %v152
    %v155 = vmul.f32 0.5, %v154
    %v156 = vsub.f32 1.5, %v155
    %v157 = vmul.f32 %v152, %v156
    %vm158 = vweird.f32 %v141
    %vm159 = vweird.f32 %v152
    %vm160 = vmor %vm158, %vm159
    %v161 = vsel %vm160, %v152, %v157
    %162 = vmatpush.msra.mxu0 %v130
    %163 = vmatpush.msra.mxu0 %v129
    %164 = vmatpush.msra.mxu0 %v128
    %165 = vmatpush.msra.mxu0 %v127
    %166 = vmatpush.msra.mxu0 %v126
    %167 = vmatpush.msra.mxu0 %v125
    %168 = vmatpush.msra.mxu0 %v124
    %169 = vmatpush.msra.mxu0 %v123
    %170 = vmatpush.msra.mxu0 %v122
    %171 = vmatpush.msra.mxu0 %v121
    %172 = vmatpush.msra.mxu0 %v120
    %173 = vmatpush.msra.mxu0 %v119
    %174 = vmatpush.msra.mxu0 %v118
    %175 = vmatpush.msra.mxu0 %v117
    %176 = vmatpush.msra.mxu0 %v116
    %177 = vmatpush.msra.mxu0 %v115
    %178 = vmatmul.f32.gmra.mxu0 %v97
    %v179 = vpop.f32.mrf.mxu0
    %v180 = vadd.f32 0.0, %v179
    %181 = vmatmul.f32.gmra.mxu0 %v98
    %v182 = vpop.f32.mrf.mxu0
    %v183 = vadd.f32 0.0, %v182
    %184 = vdwg.mxu0
    %v185 = vmul.f32 %v151, %v180
    %v186 = vmul.f32 %v161, %v183
    %v188 = vsel %vm131, %v99, 0
    %v191 = vsel %vm131, %v100, 0
    %193 = vmatpush.msra.mxu0 0.0
    %194 = vmatpush.msra.mxu0 0.0
    %195 = vmatpush.msra.mxu0 0.0
    %196 = vmatpush.msra.mxu0 0.0
    %197 = vmatpush.msra.mxu0 0.0
    %198 = vmatpush.msra.mxu0 0.0
    %199 = vmatpush.msra.mxu0 0.0
    %200 = vmatpush.msra.mxu0 0.0
    %201 = vmatpush.msra.mxu0 0.0
    %202 = vmatpush.msra.mxu0 0.0
    %203 = vmatpush.msra.mxu0 0.0
    %204 = vmatpush.msra.mxu0 0.0
    %205 = vmatpush.msra.mxu0 0.0
    %206 = vmatpush.msra.mxu0 0.0
    %207 = vmatpush.msra.mxu0 %v186
    %208 = vmatpush.msra.mxu0 %v185
    %209 = vmatmul.f32.gmra.mxu0 %v188
    %v210 = vpop.f32.mrf.mxu0
    %v211 = vadd.f32 %v185, %v210
    %212 = vmatmul.f32.gmra.mxu0 %v191
    %v213 = vpop.f32.mrf.mxu0
    %v214 = vadd.f32 %v186, %v213
    %215 = vdwg.mxu0
    %v216 = vmul.f32 %v151, %v211
    %v217 = vmul.f32 %v161, %v214
    %v218 = vperm.slane %v101, 0
    %v219 = vadd.f32 %v216, %v218
    %v220 = vadd.f32 %v217, %v218
    %v221 = vmax.f32 %v219, 0.0
    %v222 = vmax.f32 %v220, 0.0
    %223 = vmatpush.msra.mxu0 0.0
    %224 = vmatpush.msra.mxu0 0.0
    %225 = vmatpush.msra.mxu0 0.0
    %226 = vmatpush.msra.mxu0 0.0
    %227 = vmatpush.msra.mxu0 0.0
    %228 = vmatpush.msra.mxu0 0.0
    %229 = vmatpush.msra.mxu0 0.0
    %230 = vmatpush.msra.mxu0 0.0
    %231 = vmatpush.msra.mxu0 0.0
    %232 = vmatpush.msra.mxu0 0.0
    %233 = vmatpush.msra.mxu0 0.0
    %234 = vmatpush.msra.mxu0 0.0
    %235 = vmatpush.msra.mxu0 0.0
    %236 = vmatpush.msra.mxu0 0.0
    %237 = vmatpush.msra.mxu0 %v222
    %238 = vmatpush.msra.mxu0 %v221
    %239 = vmatmul.f32.gmra.mxu0 %v188
    %v240 = vpop.f32.mrf.mxu0
    %v241 = vadd.f32 0.0, %v240
    %242 = vmatmul.f32.gmra.mxu0 %v191
    %v243 = vpop.f32.mrf.mxu0
    %v244 = vadd.f32 0.0, %v243
    %245 = vdwg.mxu0
    %v246 = vperm.slane %v101, 6
    %v247 = vmul.f32 %v241, %v246
    %v248 = vmul.f32 %v244, %v246
    %v249 = vperm.slane %v101, 7
    %v250 = vmul.f32 %v221, %v249
    %v251 = vmul.f32 %v222, %v249
    %v252 = vadd.f32 %v247, %v250
    %v253 = vadd.f32 %v248, %v251
    %254 = vadd.xlane.f32.xlu0 %v252
    %v255 = vpop.xlane.xlu0 %254
    %256 = vadd.xlane.f32.xlu0 %v253
    %v257 = vpop.xlane.xlu0 %256
    %v258 = vstv %s114
    %v259 = vadd.f32 %v255, %v258
    %v260 = vadd.f32 %v257, %v258
    %v261 = vtanh.pop %v259
    %v262 = vtanh.pop %v260
    %vm263 = vcmp.gt.f32.partialorder 1.0, 0.0
    %v264 = vsel %vm263, %v261, -1e+30
    %v265 = vsel %vm263, %v262, -1e+30
    %v266 = vmul.f32 %v264, %v112
    %v267 = vmul.f32 %v265, %v113
    %v268 = vsel %vm131, %v266, 0.0
    %v269 = vsel %vm131, %v267, 0.0
    %v270 = vadd.f32 %v268, %v269
    %v271 = vrot.slane %v270, 4
    %v272 = vadd.f32 %v270, %v271
    %v273 = vrot.slane %v272, 2
    %v274 = vadd.f32 %v272, %v273
    %v275 = vrot.slane %v274, 1
    %v276 = vadd.f32 %v274, %v275
    %vm277 = vcmp.gt.f32.partialorder %v276, %v264
    %vm278 = vcmp.gt.f32.partialorder %v276, %v265
    %vm279 = vcmp.eq.f32.partialorder %v276, %v264
    %vm280 = vcmp.eq.f32.partialorder %v276, %v265
    %vm281 = vcmp.lt.s32.totalorder %v107, %v104
    %vm282 = vcmp.lt.s32.totalorder %v107, %v105
    %vm283 = vmand %vm279, %vm281
    %vm284 = vmand %vm280, %vm282
    %vm285 = vmor %vm277, %vm283
    %vm286 = vmor %vm278, %vm284
    %v287 = vsel %vm285, 1, 0
    %v288 = vsel %vm286, 1, 0
    %v289 = vcvt.s32.f32 %v287
    %v290 = vcvt.s32.f32 %v288
    %v291 = vsel %vm131, %v289, 0.0
    %292 = vadd.xlane.f32.xlu0 %v291
    %v293 = vpop.xlane.xlu0 %292
    %v294 = vsel %vm131, %v290, 0.0
    %295 = vadd.xlane.f32.xlu0 %v294
    %v296 = vpop.xlane.xlu0 %295
    %vm297 = vcmp.lt.f32.partialorder %v293, 8.0
    %vm298 = vcmp.lt.f32.partialorder %v296, 8.0
    %vm299 = vmand %vm263, %vm297
    %vm300 = vmand %vm263, %vm298
    %v301 = vsel %vm299, 1.0, 0.0
    %v302 = vsel %vm300, 1.0, 0.0
    %v303 = vmul.f32 %v301, %v112
    %v304 = vmul.f32 %v302, %v113
    %v305 = vsel %vm131, %v303, 0.0
    %v306 = vsel %vm131, %v304, 0.0
    %v307 = vadd.f32 %v305, %v306
    %v308 = vrot.slane %v307, 4
    %v309 = vadd.f32 %v307, %v308
    %v310 = vrot.slane %v309, 2
    %v311 = vadd.f32 %v309, %v310
    %v312 = vrot.slane %v311, 1
    %v313 = vadd.f32 %v311, %v312
    %v314 = vmul.f32 %v221, %v261
    %v315 = vmul.f32 %v222, %v262
    %v316 = vmul.f32 %v314, %v301
    %v317 = vmul.f32 %v315, %v302
    %v318 = vadd.f32 %v316, %v317
    %v319 = vrot.slane %v318, 4
    %v320 = vadd.f32 %v318, %v319
    %v321 = vrot.slane %v320, 2
    %v322 = vadd.f32 %v320, %v321
    %v323 = vrot.slane %v322, 1
    %v324 = vadd.f32 %v322, %v323
    %v325 = vrcp.pop 8.0
    %v326 = vmul.f32 8.0, %v325
    %v327 = vsub.f32 1.0, %v326
    %v328 = vmul.f32 %v325, %v327
    %v329 = vadd.f32 %v325, %v328
    %vm330 = vweird.f32 %v325
    %v331 = vsel %vm330, %v325, %v329
    %v332 = vmul.f32 %v324, %v331
    %vm333 = vcmp.gt.f32.partialorder %v301, 0.0
    %vm334 = vcmp.gt.f32.partialorder %v302, 0.0
    %v335 = vsel %vm333, 1, 0
    %v336 = vsel %vm334, 1, 0
    %vm337 = vcmp.eq.s32.totalorder %v335, 1
    %vm338 = vcmp.eq.s32.totalorder %v336, 1
    %v339 = vsel %vm337, %v314, -1e+30
    %v340 = vsel %vm338, %v315, -1e+30
    %v341 = vmax.f32 %v339, %v340
    %v342 = vrot.slane %v341, 4
    %v343 = vmax.f32 %v341, %v342
    %v344 = vrot.slane %v343, 2
    %v345 = vmax.f32 %v343, %v344
    %v346 = vrot.slane %v345, 1
    %v347 = vmax.f32 %v345, %v346
    %s348 = sld [smem:[#allocation11 + $0x1]]
    %v349 = vld [vmem:[#allocation8 + $0x80] sm:$0xff]
    %v350 = vld [vmem:[#allocation8 + $0x88] sm:$0xff]
    %v351 = vld [vmem:[#allocation8 + $0x90] sm:$0xff]
    %v352 = vld [vmem:[#allocation8 + $0x98] sm:$0xff]
    %v353 = vld [vmem:[#allocation8 + $0xa0] sm:$0xff]
    %v354 = vld [vmem:[#allocation8 + $0xa8] sm:$0xff]
    %v355 = vld [vmem:[#allocation8 + $0xb0] sm:$0xff]
    %v356 = vld [vmem:[#allocation8 + $0xb8] sm:$0xff]
    %v357 = vld [vmem:[#allocation8 + $0xc0] sm:$0xff]
    %v358 = vld [vmem:[#allocation8 + $0xc8] sm:$0xff]
    %v359 = vld [vmem:[#allocation8 + $0xd0] sm:$0xff]
    %v360 = vld [vmem:[#allocation8 + $0xd8] sm:$0xff]
    %v361 = vld [vmem:[#allocation8 + $0xe0] sm:$0xff]
    %v362 = vld [vmem:[#allocation8 + $0xe8] sm:$0xff]
    %v363 = vld [vmem:[#allocation8 + $0xf0] sm:$0xff]
    %v364 = vld [vmem:[#allocation8 + $0xf8] sm:$0xff]
    %v365 = vmul.f32 %v99, %v313
    %v366 = vmul.f32 %v100, %v313
    %v367 = vsel %vm131, %v365, 0.0
    %368 = vadd.xlane.f32.xlu0 %v367
    %v369 = vpop.xlane.xlu0 %368
    %v370 = vsel %vm131, %v366, 0.0
    %371 = vadd.xlane.f32.xlu0 %v370
    %v372 = vpop.xlane.xlu0 %371
    %v373 = vmul.f32 %v301, %v369
    %v374 = vmul.f32 %v302, %v372
    %v375 = vadd.f32 %v373, %v301
    %v376 = vadd.f32 %v374, %v302
    %v377 = vmax.f32 %v375, 1.0
    %v378 = vmax.f32 %v376, 1.0
    %v379 = vrsqrt.pop %v377
    %v380 = vmul.f32 %v379, %v377
    %v381 = vmul.f32 %v380, %v379
    %v382 = vmul.f32 0.5, %v381
    %v383 = vsub.f32 1.5, %v382
    %v384 = vmul.f32 %v379, %v383
    %vm385 = vweird.f32 %v377
    %vm386 = vweird.f32 %v379
    %vm387 = vmor %vm385, %vm386
    %v388 = vsel %vm387, %v379, %v384
    %v389 = vrsqrt.pop %v378
    %v390 = vmul.f32 %v389, %v378
    %v391 = vmul.f32 %v390, %v389
    %v392 = vmul.f32 0.5, %v391
    %v393 = vsub.f32 1.5, %v392
    %v394 = vmul.f32 %v389, %v393
    %vm395 = vweird.f32 %v378
    %vm396 = vweird.f32 %v389
    %vm397 = vmor %vm395, %vm396
    %v398 = vsel %vm397, %v389, %v394
    %v399 = vmul.f32 %v301, %v388
    %v400 = vmul.f32 %v302, %v398
    %401 = vmatpush.msra.mxu0 %v364
    %402 = vmatpush.msra.mxu0 %v363
    %403 = vmatpush.msra.mxu0 %v362
    %404 = vmatpush.msra.mxu0 %v361
    %405 = vmatpush.msra.mxu0 %v360
    %406 = vmatpush.msra.mxu0 %v359
    %407 = vmatpush.msra.mxu0 %v358
    %408 = vmatpush.msra.mxu0 %v357
    %409 = vmatpush.msra.mxu0 %v356
    %410 = vmatpush.msra.mxu0 %v355
    %411 = vmatpush.msra.mxu0 %v354
    %412 = vmatpush.msra.mxu0 %v353
    %413 = vmatpush.msra.mxu0 %v352
    %414 = vmatpush.msra.mxu0 %v351
    %415 = vmatpush.msra.mxu0 %v350
    %416 = vmatpush.msra.mxu0 %v349
    %417 = vmatmul.f32.gmra.mxu0 %v314
    %v418 = vpop.f32.mrf.mxu0
    %v419 = vadd.f32 0.0, %v418
    %420 = vmatmul.f32.gmra.mxu0 %v315
    %v421 = vpop.f32.mrf.mxu0
    %v422 = vadd.f32 0.0, %v421
    %423 = vdwg.mxu0
    %v424 = vmul.f32 %v399, %v419
    %v425 = vmul.f32 %v400, %v422
    %426 = vmatpush.msra.mxu0 0.0
    %427 = vmatpush.msra.mxu0 0.0
    %428 = vmatpush.msra.mxu0 0.0
    %429 = vmatpush.msra.mxu0 0.0
    %430 = vmatpush.msra.mxu0 0.0
    %431 = vmatpush.msra.mxu0 0.0
    %432 = vmatpush.msra.mxu0 0.0
    %433 = vmatpush.msra.mxu0 0.0
    %434 = vmatpush.msra.mxu0 0.0
    %435 = vmatpush.msra.mxu0 0.0
    %436 = vmatpush.msra.mxu0 0.0
    %437 = vmatpush.msra.mxu0 0.0
    %438 = vmatpush.msra.mxu0 0.0
    %439 = vmatpush.msra.mxu0 0.0
    %440 = vmatpush.msra.mxu0 %v425
    %441 = vmatpush.msra.mxu0 %v424
    %442 = vmatmul.f32.gmra.mxu0 %v188
    %v443 = vpop.f32.mrf.mxu0
    %v444 = vadd.f32 %v424, %v443
    %445 = vmatmul.f32.gmra.mxu0 %v191
    %v446 = vpop.f32.mrf.mxu0
    %v447 = vadd.f32 %v425, %v446
    %448 = vdwg.mxu0
    %v449 = vmul.f32 %v399, %v444
    %v450 = vmul.f32 %v400, %v447
    %v451 = vperm.slane %v101, 1
    %v452 = vmul.f32 %v301, %v451
    %v453 = vmul.f32 %v302, %v451
    %v454 = vadd.f32 %v449, %v452
    %v455 = vadd.f32 %v450, %v453
    %v456 = vmax.f32 %v454, 0.0
    %v457 = vmax.f32 %v455, 0.0
    %458 = vmatpush.msra.mxu0 0.0
    %459 = vmatpush.msra.mxu0 0.0
    %460 = vmatpush.msra.mxu0 0.0
    %461 = vmatpush.msra.mxu0 0.0
    %462 = vmatpush.msra.mxu0 0.0
    %463 = vmatpush.msra.mxu0 0.0
    %464 = vmatpush.msra.mxu0 0.0
    %465 = vmatpush.msra.mxu0 0.0
    %466 = vmatpush.msra.mxu0 0.0
    %467 = vmatpush.msra.mxu0 0.0
    %468 = vmatpush.msra.mxu0 0.0
    %469 = vmatpush.msra.mxu0 0.0
    %470 = vmatpush.msra.mxu0 0.0
    %471 = vmatpush.msra.mxu0 0.0
    %472 = vmatpush.msra.mxu0 %v457
    %473 = vmatpush.msra.mxu0 %v456
    %474 = vmatmul.f32.gmra.mxu0 %v188
    %v475 = vpop.f32.mrf.mxu0
    %v476 = vadd.f32 0.0, %v475
    %477 = vmatmul.f32.gmra.mxu0 %v191
    %v478 = vpop.f32.mrf.mxu0
    %v479 = vadd.f32 0.0, %v478
    %480 = vdwg.mxu0
    %v481 = vperm.slane %v102, 0
    %v482 = vmul.f32 %v476, %v481
    %v483 = vmul.f32 %v479, %v481
    %v484 = vperm.slane %v102, 1
    %v485 = vmul.f32 %v456, %v484
    %v486 = vmul.f32 %v457, %v484
    %v487 = vadd.f32 %v482, %v485
    %v488 = vadd.f32 %v483, %v486
    %489 = vadd.xlane.f32.xlu0 %v487
    %v490 = vpop.xlane.xlu0 %489
    %491 = vadd.xlane.f32.xlu0 %v488
    %v492 = vpop.xlane.xlu0 %491
    %v493 = vstv %s348
    %v494 = vadd.f32 %v490, %v493
    %v495 = vadd.f32 %v492, %v493
    %v496 = vtanh.pop %v494
    %v497 = vtanh.pop %v495
    %v498 = vsel %vm333, %v496, -1e+30
    %v499 = vsel %vm334, %v497, -1e+30
    %v500 = vmul.f32 %v498, %v112
    %v501 = vmul.f32 %v499, %v113
    %v502 = vsel %vm131, %v500, 0.0
    %v503 = vsel %vm131, %v501, 0.0
    %v504 = vadd.f32 %v502, %v503
    %v505 = vrot.slane %v504, 4
    %v506 = vadd.f32 %v504, %v505
    %v507 = vrot.slane %v506, 2
    %v508 = vadd.f32 %v506, %v507
    %v509 = vrot.slane %v508, 1
    %v510 = vadd.f32 %v508, %v509
    %vm511 = vcmp.gt.f32.partialorder %v510, %v498
    %vm512 = vcmp.gt.f32.partialorder %v510, %v499
    %vm513 = vcmp.eq.f32.partialorder %v510, %v498
    %vm514 = vcmp.eq.f32.partialorder %v510, %v499
    %vm515 = vmand %vm513, %vm281
    %vm516 = vmand %vm514, %vm282
    %vm517 = vmor %vm511, %vm515
    %vm518 = vmor %vm512, %vm516
    %v519 = vsel %vm517, 1, 0
    %v520 = vsel %vm518, 1, 0
    %v521 = vcvt.s32.f32 %v519
    %v522 = vcvt.s32.f32 %v520
    %v523 = vsel %vm131, %v521, 0.0
    %524 = vadd.xlane.f32.xlu0 %v523
    %v525 = vpop.xlane.xlu0 %524
    %v526 = vsel %vm131, %v522, 0.0
    %527 = vadd.xlane.f32.xlu0 %v526
    %v528 = vpop.xlane.xlu0 %527
    %vm529 = vcmp.lt.f32.partialorder %v525, 4.0
    %vm530 = vcmp.lt.f32.partialorder %v528, 4.0
    %vm531 = vmand %vm333, %vm529
    %vm532 = vmand %vm334, %vm530
    %v533 = vsel %vm531, 1.0, 0.0
    %v534 = vsel %vm532, 1.0, 0.0
    %v535 = vmul.f32 %v533, %v112
    %v536 = vmul.f32 %v534, %v113
    %v537 = vsel %vm131, %v535, 0.0
    %v538 = vsel %vm131, %v536, 0.0
    %v539 = vadd.f32 %v537, %v538
    %v540 = vrot.slane %v539, 4
    %v541 = vadd.f32 %v539, %v540
    %v542 = vrot.slane %v541, 2
    %v543 = vadd.f32 %v541, %v542
    %v544 = vrot.slane %v543, 1
    %v545 = vadd.f32 %v543, %v544
    %v546 = vmul.f32 %v456, %v496
    %v547 = vmul.f32 %v457, %v497
    %v548 = vmul.f32 %v546, %v533
    %v549 = vmul.f32 %v547, %v534
    %v550 = vadd.f32 %v548, %v549
    %v551 = vrot.slane %v550, 4
    %v552 = vadd.f32 %v550, %v551
    %v553 = vrot.slane %v552, 2
    %v554 = vadd.f32 %v552, %v553
    %v555 = vrot.slane %v554, 1
    %v556 = vadd.f32 %v554, %v555
    %v557 = vrcp.pop 4.0
    %v558 = vmul.f32 4.0, %v557
    %v559 = vsub.f32 1.0, %v558
    %v560 = vmul.f32 %v557, %v559
    %v561 = vadd.f32 %v557, %v560
    %vm562 = vweird.f32 %v557
    %v563 = vsel %vm562, %v557, %v561
    %v564 = vmul.f32 %v556, %v563
    %vm565 = vcmp.gt.f32.partialorder %v533, 0.0
    %vm566 = vcmp.gt.f32.partialorder %v534, 0.0
    %v567 = vsel %vm565, 1, 0
    %v568 = vsel %vm566, 1, 0
    %vm569 = vcmp.eq.s32.totalorder %v567, 1
    %vm570 = vcmp.eq.s32.totalorder %v568, 1
    %v571 = vsel %vm569, %v546, -1e+30
    %v572 = vsel %vm570, %v547, -1e+30
    %v573 = vmax.f32 %v571, %v572
    %v574 = vrot.slane %v573, 4
    %v575 = vmax.f32 %v573, %v574
    %v576 = vrot.slane %v575, 2
    %v577 = vmax.f32 %v575, %v576
    %v578 = vrot.slane %v577, 1
    %v579 = vmax.f32 %v577, %v578
    %s580 = sld [smem:[#allocation11 + $0x2]]
    %v581 = vld [vmem:[#allocation8 + $0x100] sm:$0xff]
    %v582 = vld [vmem:[#allocation8 + $0x108] sm:$0xff]
    %v583 = vld [vmem:[#allocation8 + $0x110] sm:$0xff]
    %v584 = vld [vmem:[#allocation8 + $0x118] sm:$0xff]
    %v585 = vld [vmem:[#allocation8 + $0x120] sm:$0xff]
    %v586 = vld [vmem:[#allocation8 + $0x128] sm:$0xff]
    %v587 = vld [vmem:[#allocation8 + $0x130] sm:$0xff]
    %v588 = vld [vmem:[#allocation8 + $0x138] sm:$0xff]
    %v589 = vld [vmem:[#allocation8 + $0x140] sm:$0xff]
    %v590 = vld [vmem:[#allocation8 + $0x148] sm:$0xff]
    %v591 = vld [vmem:[#allocation8 + $0x150] sm:$0xff]
    %v592 = vld [vmem:[#allocation8 + $0x158] sm:$0xff]
    %v593 = vld [vmem:[#allocation8 + $0x160] sm:$0xff]
    %v594 = vld [vmem:[#allocation8 + $0x168] sm:$0xff]
    %v595 = vld [vmem:[#allocation8 + $0x170] sm:$0xff]
    %v596 = vld [vmem:[#allocation8 + $0x178] sm:$0xff]
    %v597 = vmul.f32 %v99, %v545
    %v598 = vmul.f32 %v100, %v545
    %v599 = vsel %vm131, %v597, 0.0
    %600 = vadd.xlane.f32.xlu0 %v599
    %v601 = vpop.xlane.xlu0 %600
    %v602 = vsel %vm131, %v598, 0.0
    %603 = vadd.xlane.f32.xlu0 %v602
    %v604 = vpop.xlane.xlu0 %603
    %v605 = vmul.f32 %v533, %v601
    %v606 = vmul.f32 %v534, %v604
    %v607 = vadd.f32 %v605, %v533
    %v608 = vadd.f32 %v606, %v534
    %v609 = vmax.f32 %v607, 1.0
    %v610 = vmax.f32 %v608, 1.0
    %v611 = vrsqrt.pop %v609
    %v612 = vmul.f32 %v611, %v609
    %v613 = vmul.f32 %v612, %v611
    %v614 = vmul.f32 0.5, %v613
    %v615 = vsub.f32 1.5, %v614
    %v616 = vmul.f32 %v611, %v615
    %vm617 = vweird.f32 %v609
    %vm618 = vweird.f32 %v611
    %vm619 = vmor %vm617, %vm618
    %v620 = vsel %vm619, %v611, %v616
    %v621 = vrsqrt.pop %v610
    %v622 = vmul.f32 %v621, %v610
    %v623 = vmul.f32 %v622, %v621
    %v624 = vmul.f32 0.5, %v623
    %v625 = vsub.f32 1.5, %v624
    %v626 = vmul.f32 %v621, %v625
    %vm627 = vweird.f32 %v610
    %vm628 = vweird.f32 %v621
    %vm629 = vmor %vm627, %vm628
    %v630 = vsel %vm629, %v621, %v626
    %v631 = vmul.f32 %v533, %v620
    %v632 = vmul.f32 %v534, %v630
    %633 = vmatpush.msra.mxu0 %v596
    %634 = vmatpush.msra.mxu0 %v595
    %635 = vmatpush.msra.mxu0 %v594
    %636 = vmatpush.msra.mxu0 %v593
    %637 = vmatpush.msra.mxu0 %v592
    %638 = vmatpush.msra.mxu0 %v591
    %639 = vmatpush.msra.mxu0 %v590
    %640 = vmatpush.msra.mxu0 %v589
    %641 = vmatpush.msra.mxu0 %v588
    %642 = vmatpush.msra.mxu0 %v587
    %643 = vmatpush.msra.mxu0 %v586
    %644 = vmatpush.msra.mxu0 %v585
    %645 = vmatpush.msra.mxu0 %v584
    %646 = vmatpush.msra.mxu0 %v583
    %647 = vmatpush.msra.mxu0 %v582
    %648 = vmatpush.msra.mxu0 %v581
    %649 = vmatmul.f32.gmra.mxu0 %v546
    %v650 = vpop.f32.mrf.mxu0
    %v651 = vadd.f32 0.0, %v650
    %652 = vmatmul.f32.gmra.mxu0 %v547
    %v653 = vpop.f32.mrf.mxu0
    %v654 = vadd.f32 0.0, %v653
    %655 = vdwg.mxu0
    %v656 = vmul.f32 %v631, %v651
    %v657 = vmul.f32 %v632, %v654
    %658 = vmatpush.msra.mxu0 0.0
    %659 = vmatpush.msra.mxu0 0.0
    %660 = vmatpush.msra.mxu0 0.0
    %661 = vmatpush.msra.mxu0 0.0
    %662 = vmatpush.msra.mxu0 0.0
    %663 = vmatpush.msra.mxu0 0.0
    %664 = vmatpush.msra.mxu0 0.0
    %665 = vmatpush.msra.mxu0 0.0
    %666 = vmatpush.msra.mxu0 0.0
    %667 = vmatpush.msra.mxu0 0.0
    %668 = vmatpush.msra.mxu0 0.0
    %669 = vmatpush.msra.mxu0 0.0
    %670 = vmatpush.msra.mxu0 0.0
    %671 = vmatpush.msra.mxu0 0.0
    %672 = vmatpush.msra.mxu0 %v657
    %673 = vmatpush.msra.mxu0 %v656
    %674 = vmatmul.f32.gmra.mxu0 %v188
    %v675 = vpop.f32.mrf.mxu0
    %v676 = vadd.f32 %v656, %v675
    %677 = vmatmul.f32.gmra.mxu0 %v191
    %v678 = vpop.f32.mrf.mxu0
    %v679 = vadd.f32 %v657, %v678
    %680 = vdwg.mxu0
    %v681 = vmul.f32 %v631, %v676
    %v682 = vmul.f32 %v632, %v679
    %v683 = vperm.slane %v101, 2
    %v684 = vmul.f32 %v533, %v683
    %v685 = vmul.f32 %v534, %v683
    %v686 = vadd.f32 %v681, %v684
    %v687 = vadd.f32 %v682, %v685
    %v688 = vmax.f32 %v686, 0.0
    %v689 = vmax.f32 %v687, 0.0
    %690 = vmatpush.msra.mxu0 0.0
    %691 = vmatpush.msra.mxu0 0.0
    %692 = vmatpush.msra.mxu0 0.0
    %693 = vmatpush.msra.mxu0 0.0
    %694 = vmatpush.msra.mxu0 0.0
    %695 = vmatpush.msra.mxu0 0.0
    %696 = vmatpush.msra.mxu0 0.0
    %697 = vmatpush.msra.mxu0 0.0
    %698 = vmatpush.msra.mxu0 0.0
    %699 = vmatpush.msra.mxu0 0.0
    %700 = vmatpush.msra.mxu0 0.0
    %701 = vmatpush.msra.mxu0 0.0
    %702 = vmatpush.msra.mxu0 0.0
    %703 = vmatpush.msra.mxu0 0.0
    %704 = vmatpush.msra.mxu0 %v689
    %705 = vmatpush.msra.mxu0 %v688
    %706 = vmatmul.f32.gmra.mxu0 %v188
    %v707 = vpop.f32.mrf.mxu0
    %v708 = vadd.f32 0.0, %v707
    %709 = vmatmul.f32.gmra.mxu0 %v191
    %v710 = vpop.f32.mrf.mxu0
    %v711 = vadd.f32 0.0, %v710
    %712 = vdwg.mxu0
    %v713 = vperm.slane %v102, 2
    %v714 = vmul.f32 %v708, %v713
    %v715 = vmul.f32 %v711, %v713
    %v716 = vperm.slane %v102, 3
    %v717 = vmul.f32 %v688, %v716
    %v718 = vmul.f32 %v689, %v716
    %v719 = vadd.f32 %v714, %v717
    %v720 = vadd.f32 %v715, %v718
    %721 = vadd.xlane.f32.xlu0 %v719
    %v722 = vpop.xlane.xlu0 %721
    %723 = vadd.xlane.f32.xlu0 %v720
    %v724 = vpop.xlane.xlu0 %723
    %v725 = vstv %s580
    %v726 = vadd.f32 %v722, %v725
    %v727 = vadd.f32 %v724, %v725
    %v728 = vtanh.pop %v726
    %v729 = vtanh.pop %v727
    %v730 = vsel %vm565, %v728, -1e+30
    %v731 = vsel %vm566, %v729, -1e+30
    %v732 = vmul.f32 %v730, %v112
    %v733 = vmul.f32 %v731, %v113
    %v734 = vsel %vm131, %v732, 0.0
    %v735 = vsel %vm131, %v733, 0.0
    %v736 = vadd.f32 %v734, %v735
    %v737 = vrot.slane %v736, 4
    %v738 = vadd.f32 %v736, %v737
    %v739 = vrot.slane %v738, 2
    %v740 = vadd.f32 %v738, %v739
    %v741 = vrot.slane %v740, 1
    %v742 = vadd.f32 %v740, %v741
    %vm743 = vcmp.gt.f32.partialorder %v742, %v730
    %vm744 = vcmp.gt.f32.partialorder %v742, %v731
    %vm745 = vcmp.eq.f32.partialorder %v742, %v730
    %vm746 = vcmp.eq.f32.partialorder %v742, %v731
    %vm747 = vmand %vm745, %vm281
    %vm748 = vmand %vm746, %vm282
    %vm749 = vmor %vm743, %vm747
    %vm750 = vmor %vm744, %vm748
    %v751 = vsel %vm749, 1, 0
    %v752 = vsel %vm750, 1, 0
    %v753 = vcvt.s32.f32 %v751
    %v754 = vcvt.s32.f32 %v752
    %v755 = vsel %vm131, %v753, 0.0
    %756 = vadd.xlane.f32.xlu0 %v755
    %v757 = vpop.xlane.xlu0 %756
    %v758 = vsel %vm131, %v754, 0.0
    %759 = vadd.xlane.f32.xlu0 %v758
    %v760 = vpop.xlane.xlu0 %759
    %vm761 = vcmp.lt.f32.partialorder %v757, 2.0
    %vm762 = vcmp.lt.f32.partialorder %v760, 2.0
    %vm763 = vmand %vm565, %vm761
    %vm764 = vmand %vm566, %vm762
    %v765 = vsel %vm763, 1.0, 0.0
    %v766 = vsel %vm764, 1.0, 0.0
    %v767 = vmul.f32 %v688, %v728
    %v768 = vmul.f32 %v689, %v729
    %v769 = vmul.f32 %v767, %v765
    %v770 = vmul.f32 %v768, %v766
    %v771 = vadd.f32 %v769, %v770
    %v772 = vrot.slane %v771, 4
    %v773 = vadd.f32 %v771, %v772
    %v774 = vrot.slane %v773, 2
    %v775 = vadd.f32 %v773, %v774
    %v776 = vrot.slane %v775, 1
    %v777 = vadd.f32 %v775, %v776
    %v778 = vrcp.pop 2.0
    %v779 = vmul.f32 2.0, %v778
    %v780 = vsub.f32 1.0, %v779
    %v781 = vmul.f32 %v778, %v780
    %v782 = vadd.f32 %v778, %v781
    %vm783 = vweird.f32 %v778
    %v784 = vsel %vm783, %v778, %v782
    %v785 = vmul.f32 %v777, %v784
    %vm786 = vcmp.gt.f32.partialorder %v765, 0.0
    %vm787 = vcmp.gt.f32.partialorder %v766, 0.0
    %v788 = vsel %vm786, 1, 0
    %v789 = vsel %vm787, 1, 0
    %vm790 = vcmp.eq.s32.totalorder %v788, 1
    %vm791 = vcmp.eq.s32.totalorder %v789, 1
    %v792 = vsel %vm790, %v767, -1e+30
    %v793 = vsel %vm791, %v768, -1e+30
    %v794 = vmax.f32 %v792, %v793
    %v795 = vrot.slane %v794, 4
    %v796 = vmax.f32 %v794, %v795
    %v797 = vrot.slane %v796, 2
    %v798 = vmax.f32 %v796, %v797
    %v799 = vrot.slane %v798, 1
    %v800 = vmax.f32 %v798, %v799
    %v801 = vadd.f32 %v332, %v564
    %v802 = vadd.f32 %v801, %v785
    %v803 = vadd.f32 %v347, %v579
    %v804 = vadd.f32 %v803, %v800
    %v805 = vld [vmem:[#allocation8 + $0x180] sm:$0xff]
    %v806 = vld [vmem:[#allocation8 + $0x188] sm:$0xff]
    %v807 = vld [vmem:[#allocation8 + $0x190] sm:$0xff]
    %v808 = vld [vmem:[#allocation8 + $0x198] sm:$0xff]
    %v809 = vld [vmem:[#allocation8 + $0x1a0] sm:$0xff]
    %v810 = vld [vmem:[#allocation8 + $0x1a8] sm:$0xff]
    %v811 = vld [vmem:[#allocation8 + $0x1b0] sm:$0xff]
    %v812 = vld [vmem:[#allocation8 + $0x1b8] sm:$0xff]
    %v813 = vld [vmem:[#allocation8 + $0x1c0] sm:$0xff]
    %v814 = vld [vmem:[#allocation8 + $0x1c8] sm:$0xff]
    %v815 = vld [vmem:[#allocation8 + $0x1d0] sm:$0xff]
    %v816 = vld [vmem:[#allocation8 + $0x1d8] sm:$0xff]
    %v817 = vld [vmem:[#allocation8 + $0x1e0] sm:$0xff]
    %v818 = vld [vmem:[#allocation8 + $0x1e8] sm:$0xff]
    %v819 = vld [vmem:[#allocation8 + $0x1f0] sm:$0xff]
    %v820 = vld [vmem:[#allocation8 + $0x1f8] sm:$0xff]
    %v821 = vld [vmem:[#allocation8 + $0x200] sm:$0xff]
    %v822 = vld [vmem:[#allocation8 + $0x208] sm:$0xff]
    %v823 = vld [vmem:[#allocation8 + $0x210] sm:$0xff]
    %v824 = vld [vmem:[#allocation8 + $0x218] sm:$0xff]
    %v825 = vld [vmem:[#allocation8 + $0x220] sm:$0xff]
    %v826 = vld [vmem:[#allocation8 + $0x228] sm:$0xff]
    %v827 = vld [vmem:[#allocation8 + $0x230] sm:$0xff]
    %v828 = vld [vmem:[#allocation8 + $0x238] sm:$0xff]
    %v829 = vld [vmem:[#allocation8 + $0x240] sm:$0xff]
    %v830 = vld [vmem:[#allocation8 + $0x248] sm:$0xff]
    %v831 = vld [vmem:[#allocation8 + $0x250] sm:$0xff]
    %v832 = vld [vmem:[#allocation8 + $0x258] sm:$0xff]
    %v833 = vld [vmem:[#allocation8 + $0x260] sm:$0xff]
    %v834 = vld [vmem:[#allocation8 + $0x268] sm:$0xff]
    %v835 = vld [vmem:[#allocation8 + $0x270] sm:$0xff]
    %v836 = vld [vmem:[#allocation8 + $0x278] sm:$0xff]
    %v838 = vrot.slane %v101, 3
    %840 = vmatpush.msra.mxu0 %v820
    %841 = vmatpush.msra.mxu0 %v819
    %842 = vmatpush.msra.mxu0 %v818
    %843 = vmatpush.msra.mxu0 %v817
    %844 = vmatpush.msra.mxu0 %v816
    %845 = vmatpush.msra.mxu0 %v815
    %846 = vmatpush.msra.mxu0 %v814
    %847 = vmatpush.msra.mxu0 %v813
    %848 = vmatpush.msra.mxu0 %v812
    %849 = vmatpush.msra.mxu0 %v811
    %850 = vmatpush.msra.mxu0 %v810
    %851 = vmatpush.msra.mxu0 %v809
    %852 = vmatpush.msra.mxu0 %v808
    %853 = vmatpush.msra.mxu0 %v807
    %854 = vmatpush.msra.mxu0 %v806
    %855 = vmatpush.msra.mxu0 %v805
    %856 = vmatmul.f32.gmra.mxu0 %v802
    %v857 = vpop.f32.mrf.mxu0
    %v858 = vadd.f32 %v838, %v857
    %859 = vdwg.mxu0
    %860 = vmatpush.msra.mxu0 %v836
    %861 = vmatpush.msra.mxu0 %v835
    %862 = vmatpush.msra.mxu0 %v834
    %863 = vmatpush.msra.mxu0 %v833
    %864 = vmatpush.msra.mxu0 %v832
    %865 = vmatpush.msra.mxu0 %v831
    %866 = vmatpush.msra.mxu0 %v830
    %867 = vmatpush.msra.mxu0 %v829
    %868 = vmatpush.msra.mxu0 %v828
    %869 = vmatpush.msra.mxu0 %v827
    %870 = vmatpush.msra.mxu0 %v826
    %871 = vmatpush.msra.mxu0 %v825
    %872 = vmatpush.msra.mxu0 %v824
    %873 = vmatpush.msra.mxu0 %v823
    %874 = vmatpush.msra.mxu0 %v822
    %875 = vmatpush.msra.mxu0 %v821
    %876 = vmatmul.f32.gmra.mxu0 %v804
    %v877 = vpop.f32.mrf.mxu0
    %v878 = vadd.f32 %v858, %v877
    %879 = vdwg.mxu0
    %v880 = vmax.f32 %v878, 0.0
    %v881 = vld [vmem:[#allocation8 + $0x280] sm:$0xff]
    %v882 = vld [vmem:[#allocation8 + $0x288] sm:$0xff]
    %v883 = vld [vmem:[#allocation8 + $0x290] sm:$0xff]
    %v884 = vld [vmem:[#allocation8 + $0x298] sm:$0xff]
    %v885 = vld [vmem:[#allocation8 + $0x2a0] sm:$0xff]
    %v886 = vld [vmem:[#allocation8 + $0x2a8] sm:$0xff]
    %v887 = vld [vmem:[#allocation8 + $0x2b0] sm:$0xff]
    %v888 = vld [vmem:[#allocation8 + $0x2b8] sm:$0xff]
    %v889 = vld [vmem:[#allocation8 + $0x2c0] sm:$0xff]
    %v890 = vld [vmem:[#allocation8 + $0x2c8] sm:$0xff]
    %v891 = vld [vmem:[#allocation8 + $0x2d0] sm:$0xff]
    %v892 = vld [vmem:[#allocation8 + $0x2d8] sm:$0xff]
    %v893 = vld [vmem:[#allocation8 + $0x2e0] sm:$0xff]
    %v894 = vld [vmem:[#allocation8 + $0x2e8] sm:$0xff]
    %v895 = vld [vmem:[#allocation8 + $0x2f0] sm:$0xff]
    %v896 = vld [vmem:[#allocation8 + $0x2f8] sm:$0xff]
    %v897 = vrot.slane %v101, 4
    %899 = vmatpush.msra.mxu0 %v896
    %900 = vmatpush.msra.mxu0 %v895
    %901 = vmatpush.msra.mxu0 %v894
    %902 = vmatpush.msra.mxu0 %v893
    %903 = vmatpush.msra.mxu0 %v892
    %904 = vmatpush.msra.mxu0 %v891
    %905 = vmatpush.msra.mxu0 %v890
    %906 = vmatpush.msra.mxu0 %v889
    %907 = vmatpush.msra.mxu0 %v888
    %908 = vmatpush.msra.mxu0 %v887
    %909 = vmatpush.msra.mxu0 %v886
    %910 = vmatpush.msra.mxu0 %v885
    %911 = vmatpush.msra.mxu0 %v884
    %912 = vmatpush.msra.mxu0 %v883
    %913 = vmatpush.msra.mxu0 %v882
    %914 = vmatpush.msra.mxu0 %v881
    %915 = vmatmul.f32.gmra.mxu0 %v880
    %v916 = vpop.f32.mrf.mxu0
    %v917 = vadd.f32 %v897, %v916
    %918 = vdwg.mxu0
    %v919 = vmax.f32 %v917, 0.0
    %v920 = vld [vmem:[#allocation8 + $0x300] sm:$0xff]
    %v921 = vld [vmem:[#allocation8 + $0x308] sm:$0xff]
    %v922 = vld [vmem:[#allocation8 + $0x310] sm:$0xff]
    %v923 = vld [vmem:[#allocation8 + $0x318] sm:$0xff]
    %v924 = vld [vmem:[#allocation8 + $0x320] sm:$0xff]
    %v925 = vld [vmem:[#allocation8 + $0x328] sm:$0xff]
    %v926 = vld [vmem:[#allocation8 + $0x330] sm:$0xff]
    %v927 = vld [vmem:[#allocation8 + $0x338] sm:$0xff]
    %v928 = vld [vmem:[#allocation8 + $0x340] sm:$0xff]
    %v929 = vld [vmem:[#allocation8 + $0x348] sm:$0xff]
    %v930 = vld [vmem:[#allocation8 + $0x350] sm:$0xff]
    %v931 = vld [vmem:[#allocation8 + $0x358] sm:$0xff]
    %v932 = vld [vmem:[#allocation8 + $0x360] sm:$0xff]
    %v933 = vld [vmem:[#allocation8 + $0x368] sm:$0xff]
    %v934 = vld [vmem:[#allocation8 + $0x370] sm:$0xff]
    %v935 = vld [vmem:[#allocation8 + $0x378] sm:$0xff]
    %v936 = vrot.slane %v101, 5
    %938 = vmatpush.msra.mxu0 %v935
    %939 = vmatpush.msra.mxu0 %v934
    %940 = vmatpush.msra.mxu0 %v933
    %941 = vmatpush.msra.mxu0 %v932
    %942 = vmatpush.msra.mxu0 %v931
    %943 = vmatpush.msra.mxu0 %v930
    %944 = vmatpush.msra.mxu0 %v929
    %945 = vmatpush.msra.mxu0 %v928
    %946 = vmatpush.msra.mxu0 %v927
    %947 = vmatpush.msra.mxu0 %v926
    %948 = vmatpush.msra.mxu0 %v925
    %949 = vmatpush.msra.mxu0 %v924
    %950 = vmatpush.msra.mxu0 %v923
    %951 = vmatpush.msra.mxu0 %v922
    %952 = vmatpush.msra.mxu0 %v921
    %953 = vmatpush.msra.mxu0 %v920
    %954 = vmatmul.f32.gmra.mxu0 %v919
    %v955 = vpop.f32.mrf.mxu0
    %v956 = vadd.f32 %v936, %v955
    %957 = vdwg.mxu0
    %vm958 = vcmp.lt.s32.totalorder %v107, 4
    %v959 = vsel %vm958, %v956, -1e+30
    %vm960 = vcmask 1040384
    %v961 = vsel %vm960, %v959, -inf
    %962 = vmax.xlane.f32.xlu0 %v961
    %v963 = vpop.xlane.xlu0 %962
    %v964 = vsub.f32 %v959, %v963
    %v965 = vmul.f32 %v964, 1.442695
    %v966 = vpow.pop %v965
    %v967 = vsel %vm960, %v966, 0.0
    %968 = vadd.xlane.f32.xlu0 %v967
    %v969 = vpop.xlane.xlu0 %968
    %v970 = vlog2.pop %v969
    %v971 = vmul.f32 %v970, 0.6931472
    %v972 = vadd.f32 %v963, %v971
    %v973 = vsub.f32 %v959, %v972
    %v974 = vsel %vm958, %v973, 0.0
    %975 = vst [vmem:[#allocation12] sm:$0x1] %v974
    // Predicated region
    $region42: #{tpu_custom_call.1} parent=1 // pred_check
      _
    $region43: #{tpu_custom_call.1} parent=1 // pred_check_branch
      %977 = sbr.rel (0) target = $region45
    $region44: #{tpu_custom_call.1} parent=1 // pred_region
      %979 = vsyncadd [#allocation4], 0
      %s981 = sshll.u32 [#allocation12], 4
      %s982 = int_to_ptr.vmem [resolvable:$true] %s981
      %s983 = sshll.u32 %s5, 4
      %s984 = int_to_ptr.hbm [resolvable:$true] %s983
      %986 = dma.vmem_to_hbm [thread:$0]  %s982, 16, %s984, [#allocation4]
    $region45: #{tpu_custom_call.1} parent=1 // pred_fallthru
      _
    // Predicated region
    $region46: #{tpu_custom_call.1} parent=1 // pred_check
      _
    $region47: #{tpu_custom_call.1} parent=1 // pred_check_branch
      %988 = sbr.rel (0) target = $region49
    $region48: #{tpu_custom_call.1} parent=1 // pred_region
      %990 = dma.done [#allocation4], 16
    $region49: #{tpu_custom_call.1} parent=1 // pred_fallthru
      _
    %991 = vsyncpa [#allocation3], 1
    %992 = vsyncpa [#allocation7], 1
    %993 = vsyncpa [#allocation10], 1
    %994 = vsyncpa [#allocation4], 1
    %995 = vsyncpa [#allocation5], 1

</llo_original>
